<compile_context>
chip_gen: v5e
topology: v5e:2x2
jax: 0.10.0
libtpu: 0.0.40
codegen_flags: <defaults>
</compile_context>

<pallas_src>
import jax
import jax.numpy as jnp
from jax.experimental import pallas as pl
from jax.experimental.pallas import tpu as pltpu

BN_EPS = 1e-5
PAD_MAX = 3                 # largest halo (7x7 branch), shared by all branches
KMAX = 2 * PAD_MAX + 1      # 7 taps; smaller kernels are zero-padded to 7


# ---------------------------------------------------------------------------
# Wrapper-side weight/layout plumbing (tiny arrays, pure JAX)
# ---------------------------------------------------------------------------
def _pad_weight(wt, cin_pad, cout_pad):
    """(K,K,Ci,Co) conv weight -> (KMAX,KMAX,cin_pad,cout_pad), zero padded and
    centered so a pad=PAD_MAX conv with the padded weight equals the original
    pad=K//2 conv (extra taps / channels are exactly zero)."""
    K, _, Ci, Co = wt.shape
    off = (KMAX - K) // 2
    out = jnp.zeros((KMAX, KMAX, cin_pad, cout_pad), wt.dtype)
    return out.at[off:off + K, off:off + K, :Ci, :Co].set(wt)


def _banded_weight(wt, W):
    """(KMAX,KMAX,Ci,Co) -> (KMAX*W*Ci, W*Co) banded matrix.  The W-direction
    taps and zero padding are folded into the band; the H direction stays as
    KMAX stacked im2col blocks (matching the 7-tap activation slab)."""
    K, _, Ci, Co = wt.shape
    w_idx = jnp.arange(W)
    kw = jnp.arange(K)
    # sel[kw, w_in, w_out] = 1 iff w_in == w_out + kw - PAD_MAX
    sel = (w_idx[None, :, None] ==
           (w_idx[None, None, :] + kw[:, None, None] - PAD_MAX)).astype(wt.dtype)
    band = jnp.einsum("kio,hkcd->hicod", sel, wt)        # (KMAX, W, Ci, W, Co)
    return band.reshape(K * W * Ci, W * Co)


def _channel_pool(W, C):
    """(W*C, W*C) 0/1 matrix; rowvec @ pool broadcasts per-channel sums back
    over the lane-dense layout (lane index = w*C + c)."""
    ch = jnp.arange(W * C) % C
    return (ch[:, None] == ch[None, :]).astype(jnp.float32)


def _tile_channels(v, W, c_pad, scale=1.0):
    """(C,) per-channel BN parameter -> (W*c_pad,) lane-dense row; padded
    channels get 0 (so lane-padded activations stay exactly 0 after BN)."""
    C = v.shape[0]
    vp = jnp.zeros((c_pad,), jnp.float32).at[:C].set(scale * v.astype(jnp.float32))
    return jnp.tile(vp, W)


# ---------------------------------------------------------------------------
# Fused block forward
# ---------------------------------------------------------------------------
@jax.jit
def basic_block_search_forward(x_nchw, params):
    N, Cin, H, W = x_nchw.shape
    Cout = params["branches"][0][3].shape[-1]
    assert Cin == Cout, "stride=1 identity shortcut requires Cin == Cout"
    # TODO(synk): stride != 1 path (1x1 conv + BN shortcut, strided branch convs)
    # is not implemented; the module's default stride=1 identity shortcut is used.

    mids = [br[0].shape[-1] for br in params["branches"]]
    Cmp = max(mids)
    while (W * Cmp) % 128:            # lane-pad the mid channels to 128 lanes
        Cmp += 1
    WCin, WCM, WCout = W * Cin, W * Cmp, W * Cout
    # TODO(synk): non-lane-dense shapes (W*C not a multiple of 128) would fall
    # back to masked stores; assert instead of silently degrading.
    assert WCin % 128 == 0 and WCout % 128 == 0
    NH = N * H
    NB = len(params["branches"])
    inv_count = 1.0 / float(N * H * W)

    probs = jax.nn.softmax(params["gates"]).astype(jnp.float32)

    # Activations: lane-dense (N, H, W*Cin), H-halo padded once with PAD_MAX and
    # unrolled into a 7-tap im2col slab (NH, 7*W*Cin), cast to bf16 ONCE.
    x_ld = jnp.transpose(x_nchw, (0, 2, 3, 1)).astype(jnp.float32).reshape(N, H, WCin)
    x_pad = jnp.pad(x_ld, ((0, 0), (PAD_MAX, PAD_MAX), (0, 0)))
    x_slab = jnp.concatenate([x_pad[:, t:t + H, :] for t in range(KMAX)], axis=-1)
    x_slab = x_slab.reshape(NH, KMAX * WCin).astype(jnp.bfloat16)
    x_id = x_ld.reshape(NH, WCin)                 # f32, identity shortcut only

    band1_cols, band2_list, g1b1_list, g2b2_list = [], [], [], []
    for bi, (w1, g1, b1, w2, g2, b2) in enumerate(params["branches"]):
        band1_cols.append(_banded_weight(_pad_weight(w1, Cin, Cmp), W))    # (7*WCin, WCM)
        band2_list.append(_banded_weight(_pad_weight(w2, Cmp, Cout), W))   # (7*WCM, WCout)
        g1b1_list.append(jnp.stack([_tile_channels(g1, W, Cmp),
                                    _tile_channels(b1, W, Cmp)]))
        # softmax gate folded into the conv2 BN affine (p*gamma, p*beta)
        g2b2_list.append(jnp.stack([_tile_channels(g2, W, Cout, probs[bi]),
                                    _tile_channels(b2, W, Cout, probs[bi])]))
    band1_all = jnp.concatenate(band1_cols, axis=-1).astype(jnp.bfloat16)  # (7*WCin, NB*WCM)
    band2_all = jnp.stack(band2_list).astype(jnp.bfloat16)                 # (NB, 7*WCM, WCout)
    g1b1_all = jnp.stack(g1b1_list)                                        # (NB, 2, WCM)
    g2b2_all = jnp.stack(g2b2_list)                                        # (NB, 2, WCout)
    pool_mid = _channel_pool(W, Cmp)                                       # (WCM, WCM)
    pool_out = _channel_pool(W, Cout)                                      # (WCout, WCout)

    def kernel(x_slab_ref, x_id_ref, band1_ref, pool_mid_ref, pool_out_ref,
               band2_ref, g1b1_ref, g2b2_ref, out_ref,
               acc1_ref, midpad_ref, merged_ref):
        b = pl.program_id(0)

        def batchnorm(acc, pool, gamma, beta, relu):
            # Training-mode BN, one pass over acc: per-channel sums of x and x^2
            # broadcast back over the lane-dense layout via a tiny pool matmul.
            colsum = jnp.sum(acc, axis=0, keepdims=True)                    # (1, Wd)
            sqsum = jnp.sum(acc * acc, axis=0, keepdims=True)               # (1, Wd)
            mean = jnp.dot(colsum, pool,
                           preferred_element_type=jnp.float32) * inv_count
            ex2 = jnp.dot(sqsum, pool,
                          preferred_element_type=jnp.float32) * inv_count
            scale = jax.lax.rsqrt(ex2 - mean * mean + BN_EPS) * gamma
            y = (acc - mean) * scale + beta
            return jnp.maximum(y, 0.0) if relu else y

        @pl.when(b == 0)
        def _init():
            # conv1 for ALL branches: one (NH, 7*WCin) @ (7*WCin, NB*WCM) matmul.
            acc1 = jnp.dot(x_slab_ref[...], band1_ref[...],
                           preferred_element_type=jnp.float32)
            for bi in range(NB):
                acc1_ref[bi] = acc1[:, bi * WCM:(bi + 1) * WCM]
            # Zero the mid halo scratch ONCE (halo rows stay zero; the interior
            # and all 128 lanes are overwritten every branch).
            midpad_ref[...] = jnp.zeros(midpad_ref.shape, midpad_ref.dtype)
            merged_ref[...] = jnp.zeros(merged_ref.shape, merged_ref.dtype)

        # --- branch b: BN1 + ReLU -> conv2 (single banded matmul) -> gated BN2
        mid = batchnorm(acc1_ref[b], pool_mid_ref[...],
                        g1b1_ref[0:1, :], g1b1_ref[1:2, :], relu=True)
        midpad_ref[:, PAD_MAX:PAD_MAX + H, :] = mid.reshape(N, H, WCM)

        # 7-tap H-im2col of mid (W padding lives in the band); one bf16 cast,
        # one MXU matmul with a 896-deep contraction.
        slab2 = jnp.concatenate(
            [midpad_ref[:, t:t + H, :].reshape(NH, WCM).astype(jnp.bfloat16)
             for t in range(KMAX)], axis=-1)
        acc2 = jnp.dot(slab2, band2_ref[...], preferred_element_type=jnp.float32)
        res = batchnorm(acc2, pool_out_ref[...],
                        g2b2_ref[0:1, :], g2b2_ref[1:2, :], relu=False)
        merged_ref[...] = merged_ref[...] + res     # gate already folded into BN2

        @pl.when(b == pl.num_programs(0) - 1)
        def _finalize():
            # Identity shortcut (f32) + final ReLU; lane-dense unmasked store.
            out_ref[...] = jnp.maximum(x_id_ref[...] + merged_ref[...], 0.0)

    # TODO(synk): at production shapes this needs an additional N*H grid axis
    # marked "parallel" (two-pass cross-tile BN) so v7x's two TensorCores are
    # both used, with the tile re-sized for its 64 MiB VMEM; at these demo
    # shapes everything fits VMEM and a branch-only grid is fastest.
    grid_spec = pltpu.PrefetchScalarGridSpec(
        num_scalar_prefetch=0,
        grid=(NB,),
        in_specs=[
            pl.BlockSpec((NH, KMAX * WCin), lambda b: (0, 0)),            # x im2col (resident)
            pl.BlockSpec((NH, WCin), lambda b: (0, 0)),                   # x identity (resident)
            pl.BlockSpec((KMAX * WCin, NB * WCM), lambda b: (0, 0)),      # conv1 band (resident)
            pl.BlockSpec((WCM, WCM), lambda b: (0, 0)),                   # channel pool (mid)
            pl.BlockSpec((WCout, WCout), lambda b: (0, 0)),               # channel pool (out)
            pl.BlockSpec((None, KMAX * WCM, WCout), lambda b: (b, 0, 0)),  # conv2 band (streamed)
            pl.BlockSpec((None, 2, WCM), lambda b: (b, 0, 0)),             # BN1 gamma/beta
            pl.BlockSpec((None, 2, WCout), lambda b: (b, 0, 0)),           # BN2 gamma/beta * gate
        ],
        out_specs=pl.BlockSpec((NH, WCout), lambda b: (0, 0)),
        scratch_shapes=[
            pltpu.VMEM((NB, NH, WCM), jnp.float32),               # conv1 outputs, all branches
            pltpu.VMEM((N, H + 2 * PAD_MAX, WCM), jnp.float32),   # mid + H halo
            pltpu.VMEM((NH, WCout), jnp.float32),                 # gated residual accumulator
        ],
    )
    out_ld = pl.pallas_call(
        kernel,
        out_shape=jax.ShapeDtypeStruct((NH, WCout), jnp.float32),
        grid_spec=grid_spec,
        compiler_params=pltpu.CompilerParams(dimension_semantics=("arbitrary",)),
    )(x_slab, x_id, band1_all, pool_mid, pool_out, band2_all, g1b1_all, g2b2_all)

    return jnp.transpose(out_ld.reshape(N, H, W, Cout), (0, 3, 1, 2))


# ---------------------------------------------------------------------------
# Parameters (matches a freshly constructed, .train()-mode nn.Module)
# ---------------------------------------------------------------------------
def init_params(key, cin, mid_channels, cout):
    ks = (3, 5, 7)
    keys = jax.random.split(key, 2 * len(ks))
    branches = []
    for i, (k, cm) in enumerate(zip(ks, mid_channels)):
        w1 = 0.1 * jax.random.normal(keys[2 * i], (k, k, cin, cm), jnp.float32)
        w2 = 0.1 * jax.random.normal(keys[2 * i + 1], (k, k, cm, cout), jnp.float32)
        g1 = jnp.ones((cm,), jnp.float32)
        b1 = jnp.zeros((cm,), jnp.float32)
        g2 = jnp.ones((cout,), jnp.float32)
        b2 = jnp.zeros((cout,), jnp.float32)
        branches.append((w1, g1, b1, w2, g2, b2))
    gates = jnp.ones((3,), jnp.float32)  # nn.Parameter(torch.ones(3))
    return {"branches": branches, "gates": gates}


# ---------------------------------------------------------------------------
# Pure-JAX reference (same semantics + same bf16 MXU-input quantization)
# ---------------------------------------------------------------------------
def _ref_conv_bn(x, w, gamma, beta, pad, relu):
    y = jax.lax.conv_general_dilated(
        x.astype(jnp.bfloat16), w.astype(jnp.bfloat16),
        window_strides=(1, 1), padding=[(pad, pad), (pad, pad)],
        dimension_numbers=("NHWC", "HWIO", "NHWC"),
        preferred_element_type=jnp.float32)
    mean = jnp.mean(y, axis=(0, 1, 2), keepdims=True)
    var = jnp.mean((y - mean) ** 2, axis=(0, 1, 2), keepdims=True)
    y = (y - mean) * jax.lax.rsqrt(var + BN_EPS)
    y = y * gamma.reshape(1, 1, 1, -1) + beta.reshape(1, 1, 1, -1)
    return jnp.maximum(y, 0.0) if relu else y


def ref_forward(x_nchw, params):
    x = jnp.transpose(x_nchw, (0, 2, 3, 1)).astype(jnp.float32)
    residuals = []
    for (w1, g1, b1, w2, g2, b2) in params["branches"]:
        pad = w1.shape[0] // 2
        mid = _ref_conv_bn(x, w1, g1, b1, pad, True)
        residuals.append(_ref_conv_bn(mid, w2, g2, b2, pad, False))
    p = jax.nn.softmax(params["gates"])
    merged = sum(r * pi for r, pi in zip(residuals, p))
    return jnp.transpose(jnp.maximum(x + merged, 0.0), (0, 3, 1, 2))


if __name__ == "__main__":
    key = jax.random.PRNGKey(0)
    kx, kp = jax.random.split(key)

    # Small shapes consistent with the module: stride=1 => identity shortcut,
    # so Cin == Cout.  W*C = 128 -> perfectly lane-dense layout in the kernel.
    N, C, H, W = 2, 8, 16, 16
    mid_channels = (4, 6, 8)

    x = jax.random.normal(kx, (N, C, H, W), jnp.float32)  # PyTorch-style NCHW
    params = init_params(kp, C, mid_channels, C)

    out = jax.block_until_ready(basic_block_search_forward(x, params))
    assert out.shape == (N, C, H, W)

    ref = jax.block_until_ready(ref_forward(x, params))
    max_err = float(jnp.max(jnp.abs(out - ref)))
    assert jnp.allclose(out, ref, atol=5e-3, rtol=5e-3), f"max_err={max_err}"

    print("KERNEL_OK")
</pallas_src>

<mosaic_0001>
module attributes {stable_mosaic.version = 11 : i64} {
  func.func @kernel(%arg0: i32, %arg1: memref<32x896xbf16, #tpu.memory_space<vmem>>, %arg2: memref<32x128xf32, #tpu.memory_space<vmem>>, %arg3: memref<896x384xbf16, #tpu.memory_space<vmem>>, %arg4: memref<128x128xf32, #tpu.memory_space<vmem>>, %arg5: memref<128x128xf32, #tpu.memory_space<vmem>>, %arg6: memref<1x896x128xbf16, #tpu.memory_space<vmem>>, %arg7: memref<1x2x128xf32, #tpu.memory_space<vmem>>, %arg8: memref<1x2x128xf32, #tpu.memory_space<vmem>>, %arg9: memref<32x128xf32, #tpu.memory_space<vmem>>, %arg10: memref<3x32x128xf32, #tpu.memory_space<vmem>>, %arg11: memref<2x22x128xf32, #tpu.memory_space<vmem>>, %arg12: memref<32x128xf32, #tpu.memory_space<vmem>>) attributes {dimension_semantics = [#tpu.dimension_semantics<arbitrary>], iteration_bounds = array<i64: 3>, scalar_prefetch = 0 : i64, scratch_operands = 3 : i64, tpu.core_type = #tpu.core_type<tc>, window_params = [{pipeline_mode = #tpu.pipeline_mode<synchronous>, transform_indices = @transform_0, window_bounds = array<i64: 32, 896>}, {pipeline_mode = #tpu.pipeline_mode<synchronous>, transform_indices = @transform_1, window_bounds = array<i64: 32, 128>}, {pipeline_mode = #tpu.pipeline_mode<synchronous>, transform_indices = @transform_2, window_bounds = array<i64: 896, 384>}, {pipeline_mode = #tpu.pipeline_mode<synchronous>, transform_indices = @transform_3, window_bounds = array<i64: 128, 128>}, {pipeline_mode = #tpu.pipeline_mode<synchronous>, transform_indices = @transform_4, window_bounds = array<i64: 128, 128>}, {transform_indices = @transform_5, window_bounds = array<i64: 1, 896, 128>}, {transform_indices = @transform_6, window_bounds = array<i64: 1, 2, 128>}, {transform_indices = @transform_7, window_bounds = array<i64: 1, 2, 128>}, {pipeline_mode = #tpu.pipeline_mode<synchronous>, transform_indices = @transform_8, window_bounds = array<i64: 32, 128>}]} {
    %c0_i32 = arith.constant 0 : i32
    %0 = arith.cmpi eq, %arg0, %c0_i32 : i32
    %1 = arith.extui %0 : i1 to i32
    %c0_i32_0 = arith.constant 0 : i32
    %2 = arith.cmpi ne, %1, %c0_i32_0 : i32
    scf.if %2 {
      %c0_59 = arith.constant 0 : index
      %c0_60 = arith.constant 0 : index
      %97 = vector.load %arg1[%c0_59, %c0_60] : memref<32x896xbf16, #tpu.memory_space<vmem>>, vector<32x896xbf16>
      %c0_61 = arith.constant 0 : index
      %c0_62 = arith.constant 0 : index
      %98 = vector.load %arg3[%c0_61, %c0_62] : memref<896x384xbf16, #tpu.memory_space<vmem>>, vector<896x384xbf16>
      %cst_63 = arith.constant dense<0.000000e+00> : vector<32x384xf32>
      %99 = tpu.matmul %97, %98, %cst_63 {dimension_numbers = #tpu.dot_dimension_numbers<[1], [0], [0], [1], [0, 0, 1, 1], [], []>} : vector<32x896xbf16>, vector<896x384xbf16>, vector<32x384xf32> -> vector<32x384xf32>
      %100 = vector.extract_strided_slice %99 {offsets = [0, 0], sizes = [32, 128], strides = [1, 1]} : vector<32x384xf32> to vector<32x128xf32>
      %c0_64 = arith.constant 0 : index
      %c0_65 = arith.constant 0 : index
      %c0_66 = arith.constant 0 : index
      %101 = vector.load %arg10[%c0_64, %c0_65, %c0_66] : memref<3x32x128xf32, #tpu.memory_space<vmem>>, vector<1x32x128xf32>
      %102 = vector.shape_cast %101 : vector<1x32x128xf32> to vector<32x128xf32>
      %103 = vector.shape_cast %100 : vector<32x128xf32> to vector<1x32x128xf32>
      tpu.vector_store %arg10[%c0_64, %c0_65, %c0_66], %103 {strides = array<i32>} : memref<3x32x128xf32, #tpu.memory_space<vmem>>, vector<1x32x128xf32>,
      %104 = vector.extract_strided_slice %99 {offsets = [0, 128], sizes = [32, 128], strides = [1, 1]} : vector<32x384xf32> to vector<32x128xf32>
      %c1_67 = arith.constant 1 : index
      %c0_68 = arith.constant 0 : index
      %c0_69 = arith.constant 0 : index
      %105 = vector.load %arg10[%c1_67, %c0_68, %c0_69] : memref<3x32x128xf32, #tpu.memory_space<vmem>>, vector<1x32x128xf32>
      %106 = vector.shape_cast %105 : vector<1x32x128xf32> to vector<32x128xf32>
      %107 = vector.shape_cast %104 : vector<32x128xf32> to vector<1x32x128xf32>
      tpu.vector_store %arg10[%c1_67, %c0_68, %c0_69], %107 {strides = array<i32>} : memref<3x32x128xf32, #tpu.memory_space<vmem>>, vector<1x32x128xf32>,
      %108 = vector.extract_strided_slice %99 {offsets = [0, 256], sizes = [32, 128], strides = [1, 1]} : vector<32x384xf32> to vector<32x128xf32>
      %c2_70 = arith.constant 2 : index
      %c0_71 = arith.constant 0 : index
      %c0_72 = arith.constant 0 : index
      %109 = vector.load %arg10[%c2_70, %c0_71, %c0_72] : memref<3x32x128xf32, #tpu.memory_space<vmem>>, vector<1x32x128xf32>
      %110 = vector.shape_cast %109 : vector<1x32x128xf32> to vector<32x128xf32>
      %111 = vector.shape_cast %108 : vector<32x128xf32> to vector<1x32x128xf32>
      tpu.vector_store %arg10[%c2_70, %c0_71, %c0_72], %111 {strides = array<i32>} : memref<3x32x128xf32, #tpu.memory_space<vmem>>, vector<1x32x128xf32>,
      %cst_73 = arith.constant 0.000000e+00 : f32
      %112 = vector.broadcast %cst_73 : f32 to vector<2x22x128xf32>
      %c0_74 = arith.constant 0 : index
      %c0_75 = arith.constant 0 : index
      %c0_76 = arith.constant 0 : index
      %113 = vector.load %arg11[%c0_74, %c0_75, %c0_76] : memref<2x22x128xf32, #tpu.memory_space<vmem>>, vector<2x22x128xf32>
      tpu.vector_store %arg11[%c0_74, %c0_75, %c0_76], %112 {strides = array<i32>} : memref<2x22x128xf32, #tpu.memory_space<vmem>>, vector<2x22x128xf32>,
      %cst_77 = arith.constant 0.000000e+00 : f32
      %114 = vector.broadcast %cst_77 : f32 to vector<32x128xf32>
      %c0_78 = arith.constant 0 : index
      %c0_79 = arith.constant 0 : index
      %115 = vector.load %arg12[%c0_78, %c0_79] : memref<32x128xf32, #tpu.memory_space<vmem>>, vector<32x128xf32>
      tpu.vector_store %arg12[%c0_78, %c0_79], %114 {strides = array<i32>} : memref<32x128xf32, #tpu.memory_space<vmem>>, vector<32x128xf32>,
    } else {
    }
    %3 = arith.index_cast %arg0 : i32 to index
    %c0 = arith.constant 0 : index
    %c0_1 = arith.constant 0 : index
    %4 = vector.load %arg10[%3, %c0, %c0_1] : memref<3x32x128xf32, #tpu.memory_space<vmem>>, vector<1x32x128xf32>
    %5 = vector.shape_cast %4 : vector<1x32x128xf32> to vector<32x128xf32>
    %c0_2 = arith.constant 0 : index
    %c0_3 = arith.constant 0 : index
    %6 = vector.load %arg4[%c0_2, %c0_3] : memref<128x128xf32, #tpu.memory_space<vmem>>, vector<128x128xf32>
    %c0_4 = arith.constant 0 : index
    %c0_5 = arith.constant 0 : index
    %c0_6 = arith.constant 0 : index
    %7 = vector.load %arg7[%c0_4, %c0_5, %c0_6] : memref<1x2x128xf32, #tpu.memory_space<vmem>>, vector<1x1x128xf32>
    %8 = vector.shape_cast %7 : vector<1x1x128xf32> to vector<1x128xf32>
    %c0_7 = arith.constant 0 : index
    %c1 = arith.constant 1 : index
    %c0_8 = arith.constant 0 : index
    %9 = vector.load %arg7[%c0_7, %c1, %c0_8] : memref<1x2x128xf32, #tpu.memory_space<vmem>>, vector<1x1x128xf32>
    %10 = vector.shape_cast %9 : vector<1x1x128xf32> to vector<1x128xf32>
    %cst = arith.constant dense<0.000000e+00> : vector<128xf32>
    %11 = vector.multi_reduction <add>, %5, %cst [0] : vector<32x128xf32> to vector<128xf32>
    %12 = vector.shape_cast %11 : vector<128xf32> to vector<1x128xf32>
    %13 = arith.mulf %5, %5 : vector<32x128xf32>
    %cst_9 = arith.constant dense<0.000000e+00> : vector<128xf32>
    %14 = vector.multi_reduction <add>, %13, %cst_9 [0] : vector<32x128xf32> to vector<128xf32>
    %15 = vector.shape_cast %14 : vector<128xf32> to vector<1x128xf32>
    %cst_10 = arith.constant dense<0.000000e+00> : vector<1x128xf32>
    %16 = tpu.matmul %12, %6, %cst_10 {dimension_numbers = #tpu.dot_dimension_numbers<[1], [0], [0], [1], [0, 0, 1, 1], [], []>} : vector<1x128xf32>, vector<128x128xf32>, vector<1x128xf32> -> vector<1x128xf32>
    %cst_11 = arith.constant 0.001953125 : f32
    %17 = vector.broadcast %cst_11 : f32 to vector<1x128xf32>
    %18 = arith.mulf %16, %17 : vector<1x128xf32>
    %cst_12 = arith.constant dense<0.000000e+00> : vector<1x128xf32>
    %19 = tpu.matmul %15, %6, %cst_12 {dimension_numbers = #tpu.dot_dimension_numbers<[1], [0], [0], [1], [0, 0, 1, 1], [], []>} : vector<1x128xf32>, vector<128x128xf32>, vector<1x128xf32> -> vector<1x128xf32>
    %cst_13 = arith.constant 0.001953125 : f32
    %20 = vector.broadcast %cst_13 : f32 to vector<1x128xf32>
    %21 = arith.mulf %19, %20 : vector<1x128xf32>
    %22 = arith.mulf %18, %18 : vector<1x128xf32>
    %23 = arith.subf %21, %22 : vector<1x128xf32>
    %cst_14 = arith.constant 9.99999974E-6 : f32
    %24 = vector.broadcast %cst_14 : f32 to vector<1x128xf32>
    %25 = arith.addf %23, %24 : vector<1x128xf32>
    %26 = math.rsqrt %25 : vector<1x128xf32>
    %27 = arith.mulf %26, %8 : vector<1x128xf32>
    %28 = vector.broadcast %18 : vector<1x128xf32> to vector<32x128xf32>
    %29 = arith.subf %5, %28 : vector<32x128xf32>
    %30 = vector.broadcast %27 : vector<1x128xf32> to vector<32x128xf32>
    %31 = arith.mulf %29, %30 : vector<32x128xf32>
    %32 = vector.broadcast %10 : vector<1x128xf32> to vector<32x128xf32>
    %33 = arith.addf %31, %32 : vector<32x128xf32>
    %cst_15 = arith.constant 0.000000e+00 : f32
    %34 = vector.broadcast %cst_15 : f32 to vector<32x128xf32>
    %35 = arith.maximumf %33, %34 : vector<32x128xf32>
    %36 = vector.shape_cast %35 : vector<32x128xf32> to vector<2x16x128xf32>
    %c0_16 = arith.constant 0 : index
    %c3 = arith.constant 3 : index
    %c0_17 = arith.constant 0 : index
    %37 = vector.load %arg11[%c0_16, %c3, %c0_17] : memref<2x22x128xf32, #tpu.memory_space<vmem>>, vector<2x16x128xf32>
    tpu.vector_store %arg11[%c0_16, %c3, %c0_17], %36 {strides = array<i32>} : memref<2x22x128xf32, #tpu.memory_space<vmem>>, vector<2x16x128xf32>,
    %c0_18 = arith.constant 0 : index
    %c0_19 = arith.constant 0 : index
    %c0_20 = arith.constant 0 : index
    %38 = vector.load %arg11[%c0_18, %c0_19, %c0_20] : memref<2x22x128xf32, #tpu.memory_space<vmem>>, vector<2x16x128xf32>
    %39 = vector.shape_cast %38 : vector<2x16x128xf32> to vector<32x128xf32>
    %40 = arith.truncf %39 : vector<32x128xf32> to vector<32x128xbf16>
    %c0_21 = arith.constant 0 : index
    %c1_22 = arith.constant 1 : index
    %c0_23 = arith.constant 0 : index
    %41 = vector.load %arg11[%c0_21, %c1_22, %c0_23] : memref<2x22x128xf32, #tpu.memory_space<vmem>>, vector<2x16x128xf32>
    %42 = vector.shape_cast %41 : vector<2x16x128xf32> to vector<32x128xf32>
    %43 = arith.truncf %42 : vector<32x128xf32> to vector<32x128xbf16>
    %c0_24 = arith.constant 0 : index
    %c2 = arith.constant 2 : index
    %c0_25 = arith.constant 0 : index
    %44 = vector.load %arg11[%c0_24, %c2, %c0_25] : memref<2x22x128xf32, #tpu.memory_space<vmem>>, vector<2x16x128xf32>
    %45 = vector.shape_cast %44 : vector<2x16x128xf32> to vector<32x128xf32>
    %46 = arith.truncf %45 : vector<32x128xf32> to vector<32x128xbf16>
    %c0_26 = arith.constant 0 : index
    %c3_27 = arith.constant 3 : index
    %c0_28 = arith.constant 0 : index
    %47 = vector.load %arg11[%c0_26, %c3_27, %c0_28] : memref<2x22x128xf32, #tpu.memory_space<vmem>>, vector<2x16x128xf32>
    %48 = vector.shape_cast %47 : vector<2x16x128xf32> to vector<32x128xf32>
    %49 = arith.truncf %48 : vector<32x128xf32> to vector<32x128xbf16>
    %c0_29 = arith.constant 0 : index
    %c4 = arith.constant 4 : index
    %c0_30 = arith.constant 0 : index
    %50 = vector.load %arg11[%c0_29, %c4, %c0_30] : memref<2x22x128xf32, #tpu.memory_space<vmem>>, vector<2x16x128xf32>
    %51 = vector.shape_cast %50 : vector<2x16x128xf32> to vector<32x128xf32>
    %52 = arith.truncf %51 : vector<32x128xf32> to vector<32x128xbf16>
    %c0_31 = arith.constant 0 : index
    %c5 = arith.constant 5 : index
    %c0_32 = arith.constant 0 : index
    %53 = vector.load %arg11[%c0_31, %c5, %c0_32] : memref<2x22x128xf32, #tpu.memory_space<vmem>>, vector<2x16x128xf32>
    %54 = vector.shape_cast %53 : vector<2x16x128xf32> to vector<32x128xf32>
    %55 = arith.truncf %54 : vector<32x128xf32> to vector<32x128xbf16>
    %c0_33 = arith.constant 0 : index
    %c6 = arith.constant 6 : index
    %c0_34 = arith.constant 0 : index
    %56 = vector.load %arg11[%c0_33, %c6, %c0_34] : memref<2x22x128xf32, #tpu.memory_space<vmem>>, vector<2x16x128xf32>
    %57 = vector.shape_cast %56 : vector<2x16x128xf32> to vector<32x128xf32>
    %58 = arith.truncf %57 : vector<32x128xf32> to vector<32x128xbf16>
    %59 = tpu.concatenate %40, %43, %46, %49, %52, %55, %58 in 1 : vector<32x128xbf16>, vector<32x128xbf16>, vector<32x128xbf16>, vector<32x128xbf16>, vector<32x128xbf16>, vector<32x128xbf16>, vector<32x128xbf16> -> vector<32x896xbf16>
    %c0_35 = arith.constant 0 : index
    %c0_36 = arith.constant 0 : index
    %c0_37 = arith.constant 0 : index
    %60 = vector.load %arg6[%c0_35, %c0_36, %c0_37] : memref<1x896x128xbf16, #tpu.memory_space<vmem>>, vector<1x896x128xbf16>
    %61 = vector.shape_cast %60 : vector<1x896x128xbf16> to vector<896x128xbf16>
    %cst_38 = arith.constant dense<0.000000e+00> : vector<32x128xf32>
    %62 = tpu.matmul %59, %61, %cst_38 {dimension_numbers = #tpu.dot_dimension_numbers<[1], [0], [0], [1], [0, 0, 1, 1], [], []>} : vector<32x896xbf16>, vector<896x128xbf16>, vector<32x128xf32> -> vector<32x128xf32>
    %c0_39 = arith.constant 0 : index
    %c0_40 = arith.constant 0 : index
    %63 = vector.load %arg5[%c0_39, %c0_40] : memref<128x128xf32, #tpu.memory_space<vmem>>, vector<128x128xf32>
    %c0_41 = arith.constant 0 : index
    %c0_42 = arith.constant 0 : index
    %c0_43 = arith.constant 0 : index
    %64 = vector.load %arg8[%c0_41, %c0_42, %c0_43] : memref<1x2x128xf32, #tpu.memory_space<vmem>>, vector<1x1x128xf32>
    %65 = vector.shape_cast %64 : vector<1x1x128xf32> to vector<1x128xf32>
    %c0_44 = arith.constant 0 : index
    %c1_45 = arith.constant 1 : index
    %c0_46 = arith.constant 0 : index
    %66 = vector.load %arg8[%c0_44, %c1_45, %c0_46] : memref<1x2x128xf32, #tpu.memory_space<vmem>>, vector<1x1x128xf32>
    %67 = vector.shape_cast %66 : vector<1x1x128xf32> to vector<1x128xf32>
    %cst_47 = arith.constant dense<0.000000e+00> : vector<128xf32>
    %68 = vector.multi_reduction <add>, %62, %cst_47 [0] : vector<32x128xf32> to vector<128xf32>
    %69 = vector.shape_cast %68 : vector<128xf32> to vector<1x128xf32>
    %70 = arith.mulf %62, %62 : vector<32x128xf32>
    %cst_48 = arith.constant dense<0.000000e+00> : vector<128xf32>
    %71 = vector.multi_reduction <add>, %70, %cst_48 [0] : vector<32x128xf32> to vector<128xf32>
    %72 = vector.shape_cast %71 : vector<128xf32> to vector<1x128xf32>
    %cst_49 = arith.constant dense<0.000000e+00> : vector<1x128xf32>
    %73 = tpu.matmul %69, %63, %cst_49 {dimension_numbers = #tpu.dot_dimension_numbers<[1], [0], [0], [1], [0, 0, 1, 1], [], []>} : vector<1x128xf32>, vector<128x128xf32>, vector<1x128xf32> -> vector<1x128xf32>
    %cst_50 = arith.constant 0.001953125 : f32
    %74 = vector.broadcast %cst_50 : f32 to vector<1x128xf32>
    %75 = arith.mulf %73, %74 : vector<1x128xf32>
    %cst_51 = arith.constant dense<0.000000e+00> : vector<1x128xf32>
    %76 = tpu.matmul %72, %63, %cst_51 {dimension_numbers = #tpu.dot_dimension_numbers<[1], [0], [0], [1], [0, 0, 1, 1], [], []>} : vector<1x128xf32>, vector<128x128xf32>, vector<1x128xf32> -> vector<1x128xf32>
    %cst_52 = arith.constant 0.001953125 : f32
    %77 = vector.broadcast %cst_52 : f32 to vector<1x128xf32>
    %78 = arith.mulf %76, %77 : vector<1x128xf32>
    %79 = arith.mulf %75, %75 : vector<1x128xf32>
    %80 = arith.subf %78, %79 : vector<1x128xf32>
    %cst_53 = arith.constant 9.99999974E-6 : f32
    %81 = vector.broadcast %cst_53 : f32 to vector<1x128xf32>
    %82 = arith.addf %80, %81 : vector<1x128xf32>
    %83 = math.rsqrt %82 : vector<1x128xf32>
    %84 = arith.mulf %83, %65 : vector<1x128xf32>
    %85 = vector.broadcast %75 : vector<1x128xf32> to vector<32x128xf32>
    %86 = arith.subf %62, %85 : vector<32x128xf32>
    %87 = vector.broadcast %84 : vector<1x128xf32> to vector<32x128xf32>
    %88 = arith.mulf %86, %87 : vector<32x128xf32>
    %89 = vector.broadcast %67 : vector<1x128xf32> to vector<32x128xf32>
    %90 = arith.addf %88, %89 : vector<32x128xf32>
    %c0_54 = arith.constant 0 : index
    %c0_55 = arith.constant 0 : index
    %91 = vector.load %arg12[%c0_54, %c0_55] : memref<32x128xf32, #tpu.memory_space<vmem>>, vector<32x128xf32>
    %92 = arith.addf %91, %90 : vector<32x128xf32>
    %c0_56 = arith.constant 0 : index
    %c0_57 = arith.constant 0 : index
    %93 = vector.load %arg12[%c0_56, %c0_57] : memref<32x128xf32, #tpu.memory_space<vmem>>, vector<32x128xf32>
    tpu.vector_store %arg12[%c0_56, %c0_57], %92 {strides = array<i32>} : memref<32x128xf32, #tpu.memory_space<vmem>>, vector<32x128xf32>,
    %c2_i32 = arith.constant 2 : i32
    %94 = arith.cmpi eq, %arg0, %c2_i32 : i32
    %95 = arith.extui %94 : i1 to i32
    %c0_i32_58 = arith.constant 0 : i32
    %96 = arith.cmpi ne, %95, %c0_i32_58 : i32
    scf.if %96 {
      %c0_59 = arith.constant 0 : index
      %c0_60 = arith.constant 0 : index
      %97 = vector.load %arg2[%c0_59, %c0_60] : memref<32x128xf32, #tpu.memory_space<vmem>>, vector<32x128xf32>
      %c0_61 = arith.constant 0 : index
      %c0_62 = arith.constant 0 : index
      %98 = vector.load %arg12[%c0_61, %c0_62] : memref<32x128xf32, #tpu.memory_space<vmem>>, vector<32x128xf32>
      %99 = arith.addf %97, %98 : vector<32x128xf32>
      %cst_63 = arith.constant 0.000000e+00 : f32
      %100 = vector.broadcast %cst_63 : f32 to vector<32x128xf32>
      %101 = arith.maximumf %99, %100 : vector<32x128xf32>
      %c0_64 = arith.constant 0 : index
      %c0_65 = arith.constant 0 : index
      %102 = vector.load %arg9[%c0_64, %c0_65] : memref<32x128xf32, #tpu.memory_space<vmem>>, vector<32x128xf32>
      tpu.vector_store %arg9[%c0_64, %c0_65], %101 {strides = array<i32>} : memref<32x128xf32, #tpu.memory_space<vmem>>, vector<32x128xf32>,
    } else {
    }
    return
  }
  func.func @transform_0(%arg0: i32) -> (i32, i32) {
    %c0_i32 = arith.constant 0 : i32
    %c0_i32_0 = arith.constant 0 : i32
    %c0_i32_1 = arith.constant 0 : i32
    return %c0_i32, %c0_i32_0 : i32, i32
  }
  func.func @transform_1(%arg0: i32) -> (i32, i32) {
    %c0_i32 = arith.constant 0 : i32
    %c0_i32_0 = arith.constant 0 : i32
    %c0_i32_1 = arith.constant 0 : i32
    return %c0_i32, %c0_i32_0 : i32, i32
  }
  func.func @transform_2(%arg0: i32) -> (i32, i32) {
    %c0_i32 = arith.constant 0 : i32
    %c0_i32_0 = arith.constant 0 : i32
    %c0_i32_1 = arith.constant 0 : i32
    return %c0_i32, %c0_i32_0 : i32, i32
  }
  func.func @transform_3(%arg0: i32) -> (i32, i32) {
    %c0_i32 = arith.constant 0 : i32
    %c0_i32_0 = arith.constant 0 : i32
    %c0_i32_1 = arith.constant 0 : i32
    return %c0_i32, %c0_i32_0 : i32, i32
  }
  func.func @transform_4(%arg0: i32) -> (i32, i32) {
    %c0_i32 = arith.constant 0 : i32
    %c0_i32_0 = arith.constant 0 : i32
    %c0_i32_1 = arith.constant 0 : i32
    return %c0_i32, %c0_i32_0 : i32, i32
  }
  func.func @transform_5(%arg0: i32) -> (i32, i32, i32) {
    %c0_i32 = arith.constant 0 : i32
    %c0_i32_0 = arith.constant 0 : i32
    %c0_i32_1 = arith.constant 0 : i32
    return %arg0, %c0_i32, %c0_i32_0 : i32, i32, i32
  }
  func.func @transform_6(%arg0: i32) -> (i32, i32, i32) {
    %c0_i32 = arith.constant 0 : i32
    %c0_i32_0 = arith.constant 0 : i32
    %c0_i32_1 = arith.constant 0 : i32
    return %arg0, %c0_i32, %c0_i32_0 : i32, i32, i32
  }
  func.func @transform_7(%arg0: i32) -> (i32, i32, i32) {
    %c0_i32 = arith.constant 0 : i32
    %c0_i32_0 = arith.constant 0 : i32
    %c0_i32_1 = arith.constant 0 : i32
    return %arg0, %c0_i32, %c0_i32_0 : i32, i32, i32
  }
  func.func @transform_8(%arg0: i32) -> (i32, i32) {
    %c0_i32 = arith.constant 0 : i32
    %c0_i32_0 = arith.constant 0 : i32
    %c0_i32_1 = arith.constant 0 : i32
    return %c0_i32, %c0_i32_0 : i32, i32
  }
}

</mosaic_0001>

<llo_original>
// kernel: tile.73
$region0: #{tile.73}
  #allocation0 [shape = 's32[1]{0}', space=sflag, size = 0x4, scoped, tag = 'scoped memory for tile.73']
  %s0 = inlined_call_operand.vmem [shape: f32[8], index: 0, kind: input, shape index: {}]
  %s1 = inlined_call_operand.vmem [shape: f32[16,8], index: 1, kind: output, shape index: {}]
  // Predicated region
  $region2: #{tile.73} parent=0 // pred_check
    _
  $region3: #{tile.73} parent=0 // pred_check_branch
    %3 = sbr.rel (0) target = $region5
  $region4: #{tile.73} parent=0 // pred_region
    _
  $region5: #{tile.73} parent=0 // pred_fallthru
    _
  %v4 = vld [vmem:[%s0] ss:$0 sm:$0xff]
  %5 = vst [vmem:[%s1] sm:$0xff] %v4
  %s6 = scalar_lea.vmem %s1, 8
  %7 = vst [vmem:[%s6] sm:$0xff] %v4

// kernel: tile.78
$region0: #{tile.78}
  %s0 = inlined_call_operand.vmem [shape: f32[16,8], index: 0, kind: input, shape index: {}]
  %s1 = inlined_call_operand.vmem [shape: f32[1,128], index: 1, kind: output, shape index: {}]
  $region1: #{tile.78} parent=0
    #allocation0 [shape = 'u8[4096]{0}', space=vmem, size = 0x1000, scoped, tag = 'scoped mem for output reshape']
    %v2 = vld [vmem:[%s0] sm:$0x1]
    %vm3 = vcmask 64512
    %4 = vst.msk [vmem:[#allocation0] sm:$0x1] %vm3, %v2
    %s5 = scalar_lea.vmem %s0, 15
    %v6 = vld [vmem:[%s5] sm:$0x1]
    %7 = vrot.lane.b32.xlu0 %v6, 120
    %v8 = vpop.permute.xlu0 %7
    %vm9 = vcmask 1048512
    %10 = vst.msk [vmem:[#allocation0] sm:$0x1] %vm9, %v8
    %s11 = scalar_lea.vmem %s0, 14
    %v12 = vld [vmem:[%s11] sm:$0x1]
    %13 = vrot.lane.b32.xlu0 %v12, 112
    %v14 = vpop.permute.xlu0 %13
    %vm15 = vcmask 982912
    %16 = vst.msk [vmem:[#allocation0] sm:$0x1] %vm15, %v14
    %s17 = scalar_lea.vmem %s0, 13
    %v18 = vld [vmem:[%s17] sm:$0x1]
    %19 = vrot.lane.b32.xlu0 %v18, 104
    %v20 = vpop.permute.xlu0 %19
    %vm21 = vcmask 917312
    %22 = vst.msk [vmem:[#allocation0] sm:$0x1] %vm21, %v20
    %s23 = scalar_lea.vmem %s0, 12
    %v24 = vld [vmem:[%s23] sm:$0x1]
    %25 = vrot.lane.b32.xlu0 %v24, 96
    %v26 = vpop.permute.xlu0 %25
    %vm27 = vcmask 851712
    %28 = vst.msk [vmem:[#allocation0] sm:$0x1] %vm27, %v26
    %s29 = scalar_lea.vmem %s0, 11
    %v30 = vld [vmem:[%s29] sm:$0x1]
    %31 = vrot.lane.b32.xlu0 %v30, 88
    %v32 = vpop.permute.xlu0 %31
    %vm33 = vcmask 786112
    %34 = vst.msk [vmem:[#allocation0] sm:$0x1] %vm33, %v32
    %s35 = scalar_lea.vmem %s0, 10
    %v36 = vld [vmem:[%s35] sm:$0x1]
    %37 = vrot.lane.b32.xlu0 %v36, 80
    %v38 = vpop.permute.xlu0 %37
    %vm39 = vcmask 720512
    %40 = vst.msk [vmem:[#allocation0] sm:$0x1] %vm39, %v38
    %s41 = scalar_lea.vmem %s0, 9
    %v42 = vld [vmem:[%s41] sm:$0x1]
    %43 = vrot.lane.b32.xlu0 %v42, 72
    %v44 = vpop.permute.xlu0 %43
    %vm45 = vcmask 654912
    %46 = vst.msk [vmem:[#allocation0] sm:$0x1] %vm45, %v44
    %s47 = scalar_lea.vmem %s0, 8
    %v48 = vld [vmem:[%s47] sm:$0x1]
    %49 = vrot.lane.b32.xlu0 %v48, 64
    %v50 = vpop.permute.xlu0 %49
    %vm51 = vcmask 589312
    %52 = vst.msk [vmem:[#allocation0] sm:$0x1] %vm51, %v50
    %s53 = scalar_lea.vmem %s0, 7
    %v54 = vld [vmem:[%s53] sm:$0x1]
    %55 = vrot.lane.b32.xlu0 %v54, 56
    %v56 = vpop.permute.xlu0 %55
    %vm57 = vcmask 523712
    %58 = vst.msk [vmem:[#allocation0] sm:$0x1] %vm57, %v56
    %s59 = scalar_lea.vmem %s0, 6
    %v60 = vld [vmem:[%s59] sm:$0x1]
    %61 = vrot.lane.b32.xlu0 %v60, 48
    %v62 = vpop.permute.xlu0 %61
    %vm63 = vcmask 458112
    %64 = vst.msk [vmem:[#allocation0] sm:$0x1] %vm63, %v62
    %s65 = scalar_lea.vmem %s0, 5
    %v66 = vld [vmem:[%s65] sm:$0x1]
    %67 = vrot.lane.b32.xlu0 %v66, 40
    %v68 = vpop.permute.xlu0 %67
    %vm69 = vcmask 392512
    %70 = vst.msk [vmem:[#allocation0] sm:$0x1] %vm69, %v68
    %s71 = scalar_lea.vmem %s0, 4
    %v72 = vld [vmem:[%s71] sm:$0x1]
    %73 = vrot.lane.b32.xlu0 %v72, 32
    %v74 = vpop.permute.xlu0 %73
    %vm75 = vcmask 326912
    %76 = vst.msk [vmem:[#allocation0] sm:$0x1] %vm75, %v74
    %s77 = scalar_lea.vmem %s0, 3
    %v78 = vld [vmem:[%s77] sm:$0x1]
    %79 = vrot.lane.b32.xlu0 %v78, 24
    %v80 = vpop.permute.xlu0 %79
    %vm81 = vcmask 261312
    %82 = vst.msk [vmem:[#allocation0] sm:$0x1] %vm81, %v80
    %s83 = scalar_lea.vmem %s0, 2
    %v84 = vld [vmem:[%s83] sm:$0x1]
    %85 = vrot.lane.b32.xlu0 %v84, 16
    %v86 = vpop.permute.xlu0 %85
    %vm87 = vcmask 195712
    %88 = vst.msk [vmem:[#allocation0] sm:$0x1] %vm87, %v86
    %s89 = scalar_lea.vmem %s0, 1
    %v90 = vld [vmem:[%s89] sm:$0x1]
    %91 = vrot.lane.b32.xlu0 %v90, 8
    %v92 = vpop.permute.xlu0 %91
    %vm93 = vcmask 130112
    %94 = vst.msk [vmem:[#allocation0] sm:$0x1] %vm93, %v92
    %s96 = ssub.s32 2, 1
    %v97 = vld [vmem:[#allocation0] sm:%s96]
    %s99 = ssub.s32 2, 1
    %100 = vst [vmem:[%s1] sm:%s99] %v97

// kernel: basic_block_search_forward.1
$region0: #{basic_block_search_forward.1}
  #allocation0 [shape = 'u32[]', space=smem, size = 0x4, offset = 0x4, fixed_abs, tag = 'smem constant byte address 0x4 - core index']
  #allocation1 [shape = 'u32[72,128]{1,0:T(1,128)}', space=vmem, size = 0x9000, scoped, tag = 'internal scratch']
  #allocation2 [shape = 'f32[3,32,128]{2,1,0:T(8,128)}', space=vmem, size = 0xc000, scoped, tag = 'scratch operand']
  #allocation3 [shape = 'f32[2,22,128]{2,1,0:T(8,128)}', space=vmem, size = 0x6000, scoped, tag = 'scratch operand']
  #allocation4 [shape = 'f32[32,128]{1,0:T(8,128)}', space=vmem, size = 0x4000, scoped, tag = 'scratch operand']
  %s0 = inlined_call_operand.vmem [shape: bf16[32,896], index: 0, kind: input, shape index: {}]
  %s1 = inlined_call_operand.vmem [shape: f32[32,128], index: 1, kind: input, shape index: {}]
  %s2 = inlined_call_operand.vmem [shape: bf16[896,384], index: 2, kind: input, shape index: {}]
  %s3 = inlined_call_operand.vmem [shape: f32[128,128], index: 3, kind: input, shape index: {}, may-alias: {3,4}]
  %s4 = inlined_call_operand.vmem [shape: f32[128,128], index: 4, kind: input, shape index: {}, may-alias: {3,4}]
  %s5 = inlined_call_operand.vmem [shape: bf16[3,896,128], index: 5, kind: input, shape index: {}]
  %s6 = inlined_call_operand.vmem [shape: f32[3,2,128], index: 6, kind: input, shape index: {}]
  %s7 = inlined_call_operand.vmem [shape: f32[3,2,128], index: 7, kind: input, shape index: {}]
  %s8 = inlined_call_operand.vmem [shape: f32[32,128], index: 8, kind: output, shape index: {}]
  %s9 = sld [smem:[#allocation0]]
  $region73: #{basic_block_search_forward.1} parent=0
    _
  %s11 = ssub.s32 1, %s9
  %s12 = scalar_select 0, %s11, %s9
  loop: start=0, step=1, limit=5
  $region2: #{basic_block_search_forward.1} parent=0 // loop_pre_header
    _
  $region3: #{basic_block_search_forward.1} parent=0 // loop_header
    %s14 = sphi 0, %s18
    %p15 = scmp.ge.s32.totalorder %s14, 5
    %s22 = sphi 0, %s22
    %s24 = sphi 0, %s22
    %s25 = sphi 0, %s24
    %s39 = sphi 0, %s25
    %s43 = sphi 0, %s43
    %s45 = sphi 0, %s43
    %s46 = sphi 0, %s45
    %s60 = sphi 0, %s46
    %s64 = sphi 0, %s64
    %s66 = sphi 0, %s64
    %s67 = sphi 0, %s66
    %s81 = sphi 0, %s67
    %s85 = sphi 0, %s85
    %s87 = sphi 0, %s85
    %s88 = sphi 0, %s87
    %s102 = sphi 0, %s88
    %s106 = sphi 0, %s106
    %s108 = sphi 0, %s106
    %s109 = sphi 0, %s108
    %s123 = sphi 0, %s109
    %s129 = sphi 0, %s131
    %s132 = sphi 0, %s129
    %s133 = sphi 0, %s132
    %s149 = sphi 0, %s133
    %s155 = sphi 0, %s157
    %s158 = sphi 0, %s155
    %s159 = sphi 0, %s158
    %s175 = sphi 0, %s159
    %s181 = sphi 0, %s183
    %s184 = sphi 0, %s181
    %s185 = sphi 0, %s184
    %s201 = sphi 0, %s185
    %s205 = sphi 0, %s205
    %s207 = sphi 0, %s205
    %s208 = sphi 0, %s207
    %s222 = sphi 0, %s208
  $region4: #{basic_block_search_forward.1} parent=0 // loop_header_branch
    %17 = sbr.rel (%p15) target = $region8
  $region5: #{basic_block_search_forward.1} parent=0 // loop_body
    %s19 = ssub.s32 %s14, 1
    %s20 = ssub.s32 %s14, 2
    %s21 = sadd.s32 %s14, 1
    %s23 = sadd.s32 %s22, 1
    %p26 = scmp.eq.s32.totalorder %s14, 2
    %p27 = scmp.ne.s32.totalorder %s22, %s24
    %p28 = scmp.eq.s32.totalorder %s14, 0
    %p29 = por %p27, %p28
    %p30 = scmp.ne.s32.totalorder %s22, %s24
    %p31 = scmp.eq.s32.totalorder %s19, 2
    %p32 = por %p30, %p31
    %p33 = scmp.ne.s32.totalorder %s24, %s25
    %p34 = scmp.eq.s32.totalorder %s19, 0
    %p35 = por %p33, %p34
    %p36 = scmp.ne.s32.totalorder %s24, %s25
    %p37 = scmp.eq.s32.totalorder %s20, 2
    %p38 = por %p36, %p37
    %p40 = scmp.ne.s32.totalorder %s25, %s39
    %p41 = scmp.eq.s32.totalorder %s20, 0
    %p42 = por %p40, %p41
    %s44 = sadd.s32 %s43, 1
    %p47 = scmp.eq.s32.totalorder %s14, 2
    %p48 = scmp.ne.s32.totalorder %s43, %s45
    %p49 = scmp.eq.s32.totalorder %s14, 0
    %p50 = por %p48, %p49
    %p51 = scmp.ne.s32.totalorder %s43, %s45
    %p52 = scmp.eq.s32.totalorder %s19, 2
    %p53 = por %p51, %p52
    %p54 = scmp.ne.s32.totalorder %s45, %s46
    %p55 = scmp.eq.s32.totalorder %s19, 0
    %p56 = por %p54, %p55
    %p57 = scmp.ne.s32.totalorder %s45, %s46
    %p58 = scmp.eq.s32.totalorder %s20, 2
    %p59 = por %p57, %p58
    %p61 = scmp.ne.s32.totalorder %s46, %s60
    %p62 = scmp.eq.s32.totalorder %s20, 0
    %p63 = por %p61, %p62
    %s65 = sadd.s32 %s64, 1
    %p68 = scmp.eq.s32.totalorder %s14, 2
    %p69 = scmp.ne.s32.totalorder %s64, %s66
    %p70 = scmp.eq.s32.totalorder %s14, 0
    %p71 = por %p69, %p70
    %p72 = scmp.ne.s32.totalorder %s64, %s66
    %p73 = scmp.eq.s32.totalorder %s19, 2
    %p74 = por %p72, %p73
    %p75 = scmp.ne.s32.totalorder %s66, %s67
    %p76 = scmp.eq.s32.totalorder %s19, 0
    %p77 = por %p75, %p76
    %p78 = scmp.ne.s32.totalorder %s66, %s67
    %p79 = scmp.eq.s32.totalorder %s20, 2
    %p80 = por %p78, %p79
    %p82 = scmp.ne.s32.totalorder %s67, %s81
    %p83 = scmp.eq.s32.totalorder %s20, 0
    %p84 = por %p82, %p83
    %s86 = sadd.s32 %s85, 1
    %p89 = scmp.eq.s32.totalorder %s14, 2
    %p90 = scmp.ne.s32.totalorder %s85, %s87
    %p91 = scmp.eq.s32.totalorder %s14, 0
    %p92 = por %p90, %p91
    %p93 = scmp.ne.s32.totalorder %s85, %s87
    %p94 = scmp.eq.s32.totalorder %s19, 2
    %p95 = por %p93, %p94
    %p96 = scmp.ne.s32.totalorder %s87, %s88
    %p97 = scmp.eq.s32.totalorder %s19, 0
    %p98 = por %p96, %p97
    %p99 = scmp.ne.s32.totalorder %s87, %s88
    %p100 = scmp.eq.s32.totalorder %s20, 2
    %p101 = por %p99, %p100
    %p103 = scmp.ne.s32.totalorder %s88, %s102
    %p104 = scmp.eq.s32.totalorder %s20, 0
    %p105 = por %p103, %p104
    %s107 = sadd.s32 %s106, 1
    %p110 = scmp.eq.s32.totalorder %s14, 2
    %p111 = scmp.ne.s32.totalorder %s106, %s108
    %p112 = scmp.eq.s32.totalorder %s14, 0
    %p113 = por %p111, %p112
    %p114 = scmp.ne.s32.totalorder %s106, %s108
    %p115 = scmp.eq.s32.totalorder %s19, 2
    %p116 = por %p114, %p115
    %p117 = scmp.ne.s32.totalorder %s108, %s109
    %p118 = scmp.eq.s32.totalorder %s19, 0
    %p119 = por %p117, %p118
    %p120 = scmp.ne.s32.totalorder %s108, %s109
    %p121 = scmp.eq.s32.totalorder %s20, 2
    %p122 = por %p120, %p121
    %p124 = scmp.ne.s32.totalorder %s109, %s123
    %p125 = scmp.eq.s32.totalorder %s20, 0
    %p126 = por %p124, %p125
    %s127 = ssub.s32 %s14, %s21
    %p128 = scmp.eq.s32.totalorder %s127, 0
    %s130 = sadd.s32 %s129, 1
    %s131 = scalar_select %p128, %s129, %s130
    %p134 = pneg %p128
    %p135 = scmp.eq.s32.totalorder %s14, 2
    %p136 = por %p134, %p135
    %p137 = scmp.ne.s32.totalorder %s129, %s132
    %p138 = scmp.eq.s32.totalorder %s14, 0
    %p139 = por %p137, %p138
    %p140 = scmp.ne.s32.totalorder %s129, %s132
    %p141 = scmp.eq.s32.totalorder %s19, 2
    %p142 = por %p140, %p141
    %p143 = scmp.ne.s32.totalorder %s132, %s133
    %p144 = scmp.eq.s32.totalorder %s19, 0
    %p145 = por %p143, %p144
    %p146 = scmp.ne.s32.totalorder %s132, %s133
    %p147 = scmp.eq.s32.totalorder %s20, 2
    %p148 = por %p146, %p147
    %p150 = scmp.ne.s32.totalorder %s133, %s149
    %p151 = scmp.eq.s32.totalorder %s20, 0
    %p152 = por %p150, %p151
    %s153 = ssub.s32 %s14, %s21
    %p154 = scmp.eq.s32.totalorder %s153, 0
    %s156 = sadd.s32 %s155, 1
    %s157 = scalar_select %p154, %s155, %s156
    %p160 = pneg %p154
    %p161 = scmp.eq.s32.totalorder %s14, 2
    %p162 = por %p160, %p161
    %p163 = scmp.ne.s32.totalorder %s155, %s158
    %p164 = scmp.eq.s32.totalorder %s14, 0
    %p165 = por %p163, %p164
    %p166 = scmp.ne.s32.totalorder %s155, %s158
    %p167 = scmp.eq.s32.totalorder %s19, 2
    %p168 = por %p166, %p167
    %p169 = scmp.ne.s32.totalorder %s158, %s159
    %p170 = scmp.eq.s32.totalorder %s19, 0
    %p171 = por %p169, %p170
    %p172 = scmp.ne.s32.totalorder %s158, %s159
    %p173 = scmp.eq.s32.totalorder %s20, 2
    %p174 = por %p172, %p173
    %p176 = scmp.ne.s32.totalorder %s159, %s175
    %p177 = scmp.eq.s32.totalorder %s20, 0
    %p178 = por %p176, %p177
    %s179 = ssub.s32 %s14, %s21
    %p180 = scmp.eq.s32.totalorder %s179, 0
    %s182 = sadd.s32 %s181, 1
    %s183 = scalar_select %p180, %s181, %s182
    %p186 = pneg %p180
    %p187 = scmp.eq.s32.totalorder %s14, 2
    %p188 = por %p186, %p187
    %p189 = scmp.ne.s32.totalorder %s181, %s184
    %p190 = scmp.eq.s32.totalorder %s14, 0
    %p191 = por %p189, %p190
    %p192 = scmp.ne.s32.totalorder %s181, %s184
    %p193 = scmp.eq.s32.totalorder %s19, 2
    %p194 = por %p192, %p193
    %p195 = scmp.ne.s32.totalorder %s184, %s185
    %p196 = scmp.eq.s32.totalorder %s19, 0
    %p197 = por %p195, %p196
    %p198 = scmp.ne.s32.totalorder %s184, %s185
    %p199 = scmp.eq.s32.totalorder %s20, 2
    %p200 = por %p198, %p199
    %p202 = scmp.ne.s32.totalorder %s185, %s201
    %p203 = scmp.eq.s32.totalorder %s20, 0
    %p204 = por %p202, %p203
    %s206 = sadd.s32 %s205, 1
    %p209 = scmp.eq.s32.totalorder %s14, 2
    %p210 = scmp.ne.s32.totalorder %s205, %s207
    %p211 = scmp.eq.s32.totalorder %s14, 0
    %p212 = por %p210, %p211
    %p213 = scmp.ne.s32.totalorder %s205, %s207
    %p214 = scmp.eq.s32.totalorder %s19, 2
    %p215 = por %p213, %p214
    %p216 = scmp.ne.s32.totalorder %s207, %s208
    %p217 = scmp.eq.s32.totalorder %s19, 0
    %p218 = por %p216, %p217
    %p219 = scmp.ne.s32.totalorder %s207, %s208
    %p220 = scmp.eq.s32.totalorder %s20, 2
    %p221 = por %p219, %p220
    %p223 = scmp.ne.s32.totalorder %s208, %s222
    %p224 = scmp.eq.s32.totalorder %s20, 0
    %p225 = por %p223, %p224
    %p226 = scmp.le.s32.totalorder 1, %s14
    %p227 = scmp.lt.s32.totalorder %s14, 4
    %p228 = pnand %p226, %p227
    %p229 = pneg %p228
    // Predicated region
    $region9: #{basic_block_search_forward.1} parent=5 // pred_check
      _
    $region10: #{basic_block_search_forward.1} parent=5 // pred_check_branch
      %231 = sbr.rel (%p228) target = $region12
    $region11: #{basic_block_search_forward.1} parent=5 // pred_region
      %s232 = ssub.s32 %s14, 1
      // Predicated region
      $region13: #{basic_block_search_forward.1} parent=11 // pred_check
        %p233 = pneg %p35
      $region14: #{basic_block_search_forward.1} parent=11 // pred_check_branch
        %235 = sbr.rel (%p233) target = $region16
      $region15: #{basic_block_search_forward.1} parent=11 // pred_region
        _
      $region16: #{basic_block_search_forward.1} parent=11 // pred_fallthru
        _
      // Predicated region
      $region17: #{basic_block_search_forward.1} parent=11 // pred_check
        %p236 = pneg %p56
      $region18: #{basic_block_search_forward.1} parent=11 // pred_check_branch
        %238 = sbr.rel (%p236) target = $region20
      $region19: #{basic_block_search_forward.1} parent=11 // pred_region
        _
      $region20: #{basic_block_search_forward.1} parent=11 // pred_fallthru
        _
      // Predicated region
      $region21: #{basic_block_search_forward.1} parent=11 // pred_check
        %p239 = pneg %p77
      $region22: #{basic_block_search_forward.1} parent=11 // pred_check_branch
        %241 = sbr.rel (%p239) target = $region24
      $region23: #{basic_block_search_forward.1} parent=11 // pred_region
        _
      $region24: #{basic_block_search_forward.1} parent=11 // pred_fallthru
        _
      // Predicated region
      $region25: #{basic_block_search_forward.1} parent=11 // pred_check
        %p242 = pneg %p98
      $region26: #{basic_block_search_forward.1} parent=11 // pred_check_branch
        %244 = sbr.rel (%p242) target = $region28
      $region27: #{basic_block_search_forward.1} parent=11 // pred_region
        _
      $region28: #{basic_block_search_forward.1} parent=11 // pred_fallthru
        _
      // Predicated region
      $region29: #{basic_block_search_forward.1} parent=11 // pred_check
        %p245 = pneg %p119
      $region30: #{basic_block_search_forward.1} parent=11 // pred_check_branch
        %247 = sbr.rel (%p245) target = $region32
      $region31: #{basic_block_search_forward.1} parent=11 // pred_region
        _
      $region32: #{basic_block_search_forward.1} parent=11 // pred_fallthru
        _
    $region12: #{basic_block_search_forward.1} parent=5 // pred_fallthru
      _
    %p248 = scmp.lt.s32.totalorder %s14, 3
    // Predicated region
    $region33: #{basic_block_search_forward.1} parent=5 // pred_check
      %p249 = pneg %p248
    $region34: #{basic_block_search_forward.1} parent=5 // pred_check_branch
      %251 = sbr.rel (%p249) target = $region36
    $region35: #{basic_block_search_forward.1} parent=5 // pred_region
      // Predicated region
      $region37: #{basic_block_search_forward.1} parent=35 // pred_check
        %p252 = pneg %p139
      $region38: #{basic_block_search_forward.1} parent=35 // pred_check_branch
        %254 = sbr.rel (%p252) target = $region40
      $region39: #{basic_block_search_forward.1} parent=35 // pred_region
        %p255 = scmp.lt.s32.totalorder %s14, 2
        %s256 = scalar_select %p255, %s14, 2
        %s257 = smul.addr %s256, 112
        %s258 = smul.addr %s257, 4
        %s259 = scalar_lea.vmem %s5, %s258
      $region40: #{basic_block_search_forward.1} parent=35 // pred_fallthru
        _
      // Predicated region
      $region41: #{basic_block_search_forward.1} parent=35 // pred_check
        %p260 = pneg %p165
      $region42: #{basic_block_search_forward.1} parent=35 // pred_check_branch
        %262 = sbr.rel (%p260) target = $region44
      $region43: #{basic_block_search_forward.1} parent=35 // pred_region
        %p263 = scmp.lt.s32.totalorder %s14, 2
        %s264 = scalar_select %p263, %s14, 2
        %s265 = smul.addr %s264, 2
        %s266 = scalar_lea.vmem %s6, %s265
      $region44: #{basic_block_search_forward.1} parent=35 // pred_fallthru
        _
      // Predicated region
      $region45: #{basic_block_search_forward.1} parent=35 // pred_check
        %p267 = pneg %p191
      $region46: #{basic_block_search_forward.1} parent=35 // pred_check_branch
        %269 = sbr.rel (%p267) target = $region48
      $region47: #{basic_block_search_forward.1} parent=35 // pred_region
        %p270 = scmp.lt.s32.totalorder %s14, 2
        %s271 = scalar_select %p270, %s14, 2
        %s272 = smul.addr %s271, 2
        %s273 = scalar_lea.vmem %s7, %s272
      $region48: #{basic_block_search_forward.1} parent=35 // pred_fallthru
        _
    $region36: #{basic_block_search_forward.1} parent=5 // pred_fallthru
      _
    %p274 = scmp.le.s32.totalorder 1, %s14
    %p275 = scmp.lt.s32.totalorder %s14, 4
    %p276 = pnand %p274, %p275
    %p277 = pneg %p276
    // Predicated region
    $region49: #{basic_block_search_forward.1} parent=5 // pred_check
      _
    $region50: #{basic_block_search_forward.1} parent=5 // pred_check_branch
      %279 = sbr.rel (%p276) target = $region52
    $region51: #{basic_block_search_forward.1} parent=5 // pred_region
      %s280 = ssub.s32 %s14, 1
      %p281 = pneg %p35
      %p282 = pneg %p32
      %p283 = pneg %p56
      %p284 = pneg %p53
      %p285 = pneg %p77
      %p286 = pneg %p74
      %p287 = pneg %p98
      %p288 = pneg %p95
      %p289 = pneg %p119
      %p290 = pneg %p116
      %p291 = scmp.lt.s32.totalorder %s19, 2
      %s292 = scalar_select %p291, %s19, 2
      %s293 = smul.addr %s292, 112
      %s294 = smul.addr %s293, 4
      %s295 = scalar_lea.vmem %s5, %s294
      %p296 = pneg %p145
      %p297 = pneg %p142
      %p298 = scmp.lt.s32.totalorder %s19, 2
      %s299 = scalar_select %p298, %s19, 2
      %s300 = smul.addr %s299, 2
      %s301 = scalar_lea.vmem %s6, %s300
      %p302 = pneg %p171
      %p303 = pneg %p168
      %p304 = scmp.lt.s32.totalorder %s19, 2
      %s305 = scalar_select %p304, %s19, 2
      %s306 = smul.addr %s305, 2
      %s307 = scalar_lea.vmem %s7, %s306
      %p308 = pneg %p197
      %p309 = pneg %p194
      %p310 = pneg %p218
      %p311 = pneg %p215
      %p312 = scmp.lt.s32.totalorder %s19, 2
      %s313 = scalar_select %p312, %s19, 2
      %s314 = smul.addr %s313, 112
      %s315 = smul.addr %s314, 4
      %s316 = scalar_lea.vmem %s5, %s315
      %p317 = scmp.lt.s32.totalorder %s19, 2
      %s318 = scalar_select %p317, %s19, 2
      %s319 = smul.addr %s318, 2
      %s320 = scalar_lea.vmem %s6, %s319
      %p321 = scmp.lt.s32.totalorder %s19, 2
      %s322 = scalar_select %p321, %s19, 2
      %s323 = smul.addr %s322, 2
      %s324 = scalar_lea.vmem %s7, %s323
      %p325 = scmp.eq.s32.totalorder %s19, 0
      // Predicated region
      $region53: #{basic_block_search_forward.1} parent=51 // pred_check
        %p326 = pneg %p325
      $region54: #{basic_block_search_forward.1} parent=51 // pred_check_branch
        %328 = sbr.rel (%p326) target = $region56
      $region55: #{basic_block_search_forward.1} parent=51 // pred_region
        %v329 = vld [vmem:[%s0] sm:$0xff]
        %v330 = vld [vmem:[%s0 + $0x8] sm:$0xff]
        %v331 = vld [vmem:[%s0 + $0x10] sm:$0xff]
        %v332 = vld [vmem:[%s0 + $0x18] sm:$0xf]
        %v333 = vld [vmem:[%s0 + $0x1c] sm:$0xff]
        %v334 = vld [vmem:[%s0 + $0x24] sm:$0xff]
        %v335 = vld [vmem:[%s0 + $0x2c] sm:$0xff]
        %v336 = vld [vmem:[%s0 + $0x34] sm:$0xf]
        %v337 = vld [vmem:[%s0 + $0x38] sm:$0xff]
        %v338 = vld [vmem:[%s0 + $0x40] sm:$0xff]
        %v339 = vld [vmem:[%s0 + $0x48] sm:$0xff]
        %v340 = vld [vmem:[%s0 + $0x50] sm:$0xf]
        %v341 = vld [vmem:[%s0 + $0x54] sm:$0xff]
        %v342 = vld [vmem:[%s0 + $0x5c] sm:$0xff]
        %v343 = vld [vmem:[%s0 + $0x64] sm:$0xff]
        %v344 = vld [vmem:[%s0 + $0x6c] sm:$0xf]
        %v345 = vld [vmem:[%s2] sm:$0xff]
        %v346 = vld [vmem:[%s2 + $0x8] sm:$0xf]
        %v347 = vld [vmem:[%s2 + $0xc] sm:$0xff]
        %v348 = vld [vmem:[%s2 + $0x14] sm:$0xf]
        %v349 = vld [vmem:[%s2 + $0x18] sm:$0xff]
        %v350 = vld [vmem:[%s2 + $0x20] sm:$0xf]
        %v351 = vld [vmem:[%s2 + $0x24] sm:$0xff]
        %v352 = vld [vmem:[%s2 + $0x2c] sm:$0xf]
        %v353 = vld [vmem:[%s2 + $0x30] sm:$0xff]
        %v354 = vld [vmem:[%s2 + $0x38] sm:$0xf]
        %v355 = vld [vmem:[%s2 + $0x3c] sm:$0xff]
        %v356 = vld [vmem:[%s2 + $0x44] sm:$0xf]
        %v357 = vld [vmem:[%s2 + $0x48] sm:$0xff]
        %v358 = vld [vmem:[%s2 + $0x50] sm:$0xf]
        %v359 = vld [vmem:[%s2 + $0x54] sm:$0xff]
        %v360 = vld [vmem:[%s2 + $0x5c] sm:$0xf]
        %v361 = vld [vmem:[%s2 + $0x60] sm:$0xff]
        %v362 = vld [vmem:[%s2 + $0x68] sm:$0xf]
        %v363 = vld [vmem:[%s2 + $0x6c] sm:$0xff]
        %v364 = vld [vmem:[%s2 + $0x74] sm:$0xf]
        %v365 = vld [vmem:[%s2 + $0x78] sm:$0xff]
        %v366 = vld [vmem:[%s2 + $0x80] sm:$0xf]
        %v367 = vld [vmem:[%s2 + $0x84] sm:$0xff]
        %v368 = vld [vmem:[%s2 + $0x8c] sm:$0xf]
        %v369 = vld [vmem:[%s2 + $0x90] sm:$0xff]
        %v370 = vld [vmem:[%s2 + $0x98] sm:$0xf]
        %v371 = vld [vmem:[%s2 + $0x9c] sm:$0xff]
        %v372 = vld [vmem:[%s2 + $0xa4] sm:$0xf]
        %v373 = vld [vmem:[%s2 + $0xa8] sm:$0xff]
        %v374 = vld [vmem:[%s2 + $0xb0] sm:$0xf]
        %v375 = vld [vmem:[%s2 + $0xb4] sm:$0xff]
        %v376 = vld [vmem:[%s2 + $0xbc] sm:$0xf]
        %v377 = vld [vmem:[%s2 + $0xc0] sm:$0xff]
        %v378 = vld [vmem:[%s2 + $0xc8] sm:$0xf]
        %v379 = vld [vmem:[%s2 + $0xcc] sm:$0xff]
        %v380 = vld [vmem:[%s2 + $0xd4] sm:$0xf]
        %v381 = vld [vmem:[%s2 + $0xd8] sm:$0xff]
        %v382 = vld [vmem:[%s2 + $0xe0] sm:$0xf]
        %v383 = vld [vmem:[%s2 + $0xe4] sm:$0xff]
        %v384 = vld [vmem:[%s2 + $0xec] sm:$0xf]
        %v385 = vld [vmem:[%s2 + $0xf0] sm:$0xff]
        %v386 = vld [vmem:[%s2 + $0xf8] sm:$0xf]
        %v387 = vld [vmem:[%s2 + $0xfc] sm:$0xff]
        %v388 = vld [vmem:[%s2 + $0x104] sm:$0xf]
        %v389 = vld [vmem:[%s2 + $0x108] sm:$0xff]
        %v390 = vld [vmem:[%s2 + $0x110] sm:$0xf]
        %v391 = vld [vmem:[%s2 + $0x114] sm:$0xff]
        %v392 = vld [vmem:[%s2 + $0x11c] sm:$0xf]
        %v393 = vld [vmem:[%s2 + $0x120] sm:$0xff]
        %v394 = vld [vmem:[%s2 + $0x128] sm:$0xf]
        %v395 = vld [vmem:[%s2 + $0x12c] sm:$0xff]
        %v396 = vld [vmem:[%s2 + $0x134] sm:$0xf]
        %v397 = vld [vmem:[%s2 + $0x138] sm:$0xff]
        %v398 = vld [vmem:[%s2 + $0x140] sm:$0xf]
        %v399 = vld [vmem:[%s2 + $0x144] sm:$0xff]
        %v400 = vld [vmem:[%s2 + $0x14c] sm:$0xf]
        %v401 = vld [vmem:[%s2 + $0x150] sm:$0xff]
        %v402 = vld [vmem:[%s2 + $0x158] sm:$0xf]
        %v403 = vld [vmem:[%s2 + $0x15c] sm:$0xff]
        %v404 = vld [vmem:[%s2 + $0x164] sm:$0xf]
        %v405 = vld [vmem:[%s2 + $0x168] sm:$0xff]
        %v406 = vld [vmem:[%s2 + $0x170] sm:$0xf]
        %v407 = vld [vmem:[%s2 + $0x174] sm:$0xff]
        %v408 = vld [vmem:[%s2 + $0x17c] sm:$0xf]
        %v409 = vld [vmem:[%s2 + $0x180] sm:$0xff]
        %v410 = vld [vmem:[%s2 + $0x188] sm:$0xf]
        %v411 = vld [vmem:[%s2 + $0x18c] sm:$0xff]
        %v412 = vld [vmem:[%s2 + $0x194] sm:$0xf]
        %v413 = vld [vmem:[%s2 + $0x198] sm:$0xff]
        %v414 = vld [vmem:[%s2 + $0x1a0] sm:$0xf]
        %v415 = vld [vmem:[%s2 + $0x1a4] sm:$0xff]
        %v416 = vld [vmem:[%s2 + $0x1ac] sm:$0xf]
        %v417 = vld [vmem:[%s2 + $0x1b0] sm:$0xff]
        %v418 = vld [vmem:[%s2 + $0x1b8] sm:$0xf]
        %v419 = vld [vmem:[%s2 + $0x1bc] sm:$0xff]
        %v420 = vld [vmem:[%s2 + $0x1c4] sm:$0xf]
        %v421 = vld [vmem:[%s2 + $0x1c8] sm:$0xff]
        %v422 = vld [vmem:[%s2 + $0x1d0] sm:$0xf]
        %v423 = vld [vmem:[%s2 + $0x1d4] sm:$0xff]
        %v424 = vld [vmem:[%s2 + $0x1dc] sm:$0xf]
        %v425 = vld [vmem:[%s2 + $0x1e0] sm:$0xff]
        %v426 = vld [vmem:[%s2 + $0x1e8] sm:$0xf]
        %v427 = vld [vmem:[%s2 + $0x1ec] sm:$0xff]
        %v428 = vld [vmem:[%s2 + $0x1f4] sm:$0xf]
        %v429 = vld [vmem:[%s2 + $0x1f8] sm:$0xff]
        %v430 = vld [vmem:[%s2 + $0x200] sm:$0xf]
        %v431 = vld [vmem:[%s2 + $0x204] sm:$0xff]
        %v432 = vld [vmem:[%s2 + $0x20c] sm:$0xf]
        %v433 = vld [vmem:[%s2 + $0x210] sm:$0xff]
        %v434 = vld [vmem:[%s2 + $0x218] sm:$0xf]
        %v435 = vld [vmem:[%s2 + $0x21c] sm:$0xff]
        %v436 = vld [vmem:[%s2 + $0x224] sm:$0xf]
        %v437 = vld [vmem:[%s2 + $0x228] sm:$0xff]
        %v438 = vld [vmem:[%s2 + $0x230] sm:$0xf]
        %v439 = vld [vmem:[%s2 + $0x234] sm:$0xff]
        %v440 = vld [vmem:[%s2 + $0x23c] sm:$0xf]
        %v441 = vld [vmem:[%s2 + $0x240] sm:$0xff]
        %v442 = vld [vmem:[%s2 + $0x248] sm:$0xf]
        %v443 = vld [vmem:[%s2 + $0x24c] sm:$0xff]
        %v444 = vld [vmem:[%s2 + $0x254] sm:$0xf]
        %v445 = vld [vmem:[%s2 + $0x258] sm:$0xff]
        %v446 = vld [vmem:[%s2 + $0x260] sm:$0xf]
        %v447 = vld [vmem:[%s2 + $0x264] sm:$0xff]
        %v448 = vld [vmem:[%s2 + $0x26c] sm:$0xf]
        %v449 = vld [vmem:[%s2 + $0x270] sm:$0xff]
        %v450 = vld [vmem:[%s2 + $0x278] sm:$0xf]
        %v451 = vld [vmem:[%s2 + $0x27c] sm:$0xff]
        %v452 = vld [vmem:[%s2 + $0x284] sm:$0xf]
        %v453 = vld [vmem:[%s2 + $0x288] sm:$0xff]
        %v454 = vld [vmem:[%s2 + $0x290] sm:$0xf]
        %v455 = vld [vmem:[%s2 + $0x294] sm:$0xff]
        %v456 = vld [vmem:[%s2 + $0x29c] sm:$0xf]
        %v457 = vld [vmem:[%s2 + $0x2a0] sm:$0xff]
        %v458 = vld [vmem:[%s2 + $0x2a8] sm:$0xf]
        %v459 = vld [vmem:[%s2 + $0x2ac] sm:$0xff]
        %v460 = vld [vmem:[%s2 + $0x2b4] sm:$0xf]
        %v461 = vld [vmem:[%s2 + $0x2b8] sm:$0xff]
        %v462 = vld [vmem:[%s2 + $0x2c0] sm:$0xf]
        %v463 = vld [vmem:[%s2 + $0x2c4] sm:$0xff]
        %v464 = vld [vmem:[%s2 + $0x2cc] sm:$0xf]
        %v465 = vld [vmem:[%s2 + $0x2d0] sm:$0xff]
        %v466 = vld [vmem:[%s2 + $0x2d8] sm:$0xf]
        %v467 = vld [vmem:[%s2 + $0x2dc] sm:$0xff]
        %v468 = vld [vmem:[%s2 + $0x2e4] sm:$0xf]
        %v469 = vld [vmem:[%s2 + $0x2e8] sm:$0xff]
        %v470 = vld [vmem:[%s2 + $0x2f0] sm:$0xf]
        %v471 = vld [vmem:[%s2 + $0x2f4] sm:$0xff]
        %v472 = vld [vmem:[%s2 + $0x2fc] sm:$0xf]
        %v473 = vld [vmem:[%s2 + $0x300] sm:$0xff]
        %v474 = vld [vmem:[%s2 + $0x308] sm:$0xf]
        %v475 = vld [vmem:[%s2 + $0x30c] sm:$0xff]
        %v476 = vld [vmem:[%s2 + $0x314] sm:$0xf]
        %v477 = vld [vmem:[%s2 + $0x318] sm:$0xff]
        %v478 = vld [vmem:[%s2 + $0x320] sm:$0xf]
        %v479 = vld [vmem:[%s2 + $0x324] sm:$0xff]
        %v480 = vld [vmem:[%s2 + $0x32c] sm:$0xf]
        %v481 = vld [vmem:[%s2 + $0x330] sm:$0xff]
        %v482 = vld [vmem:[%s2 + $0x338] sm:$0xf]
        %v483 = vld [vmem:[%s2 + $0x33c] sm:$0xff]
        %v484 = vld [vmem:[%s2 + $0x344] sm:$0xf]
        %v485 = vld [vmem:[%s2 + $0x348] sm:$0xff]
        %v486 = vld [vmem:[%s2 + $0x350] sm:$0xf]
        %v487 = vld [vmem:[%s2 + $0x354] sm:$0xff]
        %v488 = vld [vmem:[%s2 + $0x35c] sm:$0xf]
        %v489 = vld [vmem:[%s2 + $0x360] sm:$0xff]
        %v490 = vld [vmem:[%s2 + $0x368] sm:$0xf]
        %v491 = vld [vmem:[%s2 + $0x36c] sm:$0xff]
        %v492 = vld [vmem:[%s2 + $0x374] sm:$0xf]
        %v493 = vld [vmem:[%s2 + $0x378] sm:$0xff]
        %v494 = vld [vmem:[%s2 + $0x380] sm:$0xf]
        %v495 = vld [vmem:[%s2 + $0x384] sm:$0xff]
        %v496 = vld [vmem:[%s2 + $0x38c] sm:$0xf]
        %v497 = vld [vmem:[%s2 + $0x390] sm:$0xff]
        %v498 = vld [vmem:[%s2 + $0x398] sm:$0xf]
        %v499 = vld [vmem:[%s2 + $0x39c] sm:$0xff]
        %v500 = vld [vmem:[%s2 + $0x3a4] sm:$0xf]
        %v501 = vld [vmem:[%s2 + $0x3a8] sm:$0xff]
        %v502 = vld [vmem:[%s2 + $0x3b0] sm:$0xf]
        %v503 = vld [vmem:[%s2 + $0x3b4] sm:$0xff]
        %v504 = vld [vmem:[%s2 + $0x3bc] sm:$0xf]
        %v505 = vld [vmem:[%s2 + $0x3c0] sm:$0xff]
        %v506 = vld [vmem:[%s2 + $0x3c8] sm:$0xf]
        %v507 = vld [vmem:[%s2 + $0x3cc] sm:$0xff]
        %v508 = vld [vmem:[%s2 + $0x3d4] sm:$0xf]
        %v509 = vld [vmem:[%s2 + $0x3d8] sm:$0xff]
        %v510 = vld [vmem:[%s2 + $0x3e0] sm:$0xf]
        %v511 = vld [vmem:[%s2 + $0x3e4] sm:$0xff]
        %v512 = vld [vmem:[%s2 + $0x3ec] sm:$0xf]
        %v513 = vld [vmem:[%s2 + $0x3f0] sm:$0xff]
        %v514 = vld [vmem:[%s2 + $0x3f8] sm:$0xf]
        %v515 = vld [vmem:[%s2 + $0x3fc] sm:$0xff]
        %v516 = vld [vmem:[%s2 + $0x404] sm:$0xf]
        %v517 = vld [vmem:[%s2 + $0x408] sm:$0xff]
        %v518 = vld [vmem:[%s2 + $0x410] sm:$0xf]
        %v519 = vld [vmem:[%s2 + $0x414] sm:$0xff]
        %v520 = vld [vmem:[%s2 + $0x41c] sm:$0xf]
        %v521 = vld [vmem:[%s2 + $0x420] sm:$0xff]
        %v522 = vld [vmem:[%s2 + $0x428] sm:$0xf]
        %v523 = vld [vmem:[%s2 + $0x42c] sm:$0xff]
        %v524 = vld [vmem:[%s2 + $0x434] sm:$0xf]
        %v525 = vld [vmem:[%s2 + $0x438] sm:$0xff]
        %v526 = vld [vmem:[%s2 + $0x440] sm:$0xf]
        %v527 = vld [vmem:[%s2 + $0x444] sm:$0xff]
        %v528 = vld [vmem:[%s2 + $0x44c] sm:$0xf]
        %v529 = vld [vmem:[%s2 + $0x450] sm:$0xff]
        %v530 = vld [vmem:[%s2 + $0x458] sm:$0xf]
        %v531 = vld [vmem:[%s2 + $0x45c] sm:$0xff]
        %v532 = vld [vmem:[%s2 + $0x464] sm:$0xf]
        %v533 = vld [vmem:[%s2 + $0x468] sm:$0xff]
        %v534 = vld [vmem:[%s2 + $0x470] sm:$0xf]
        %v535 = vld [vmem:[%s2 + $0x474] sm:$0xff]
        %v536 = vld [vmem:[%s2 + $0x47c] sm:$0xf]
        %v537 = vld [vmem:[%s2 + $0x480] sm:$0xff]
        %v538 = vld [vmem:[%s2 + $0x488] sm:$0xf]
        %v539 = vld [vmem:[%s2 + $0x48c] sm:$0xff]
        %v540 = vld [vmem:[%s2 + $0x494] sm:$0xf]
        %v541 = vld [vmem:[%s2 + $0x498] sm:$0xff]
        %v542 = vld [vmem:[%s2 + $0x4a0] sm:$0xf]
        %v543 = vld [vmem:[%s2 + $0x4a4] sm:$0xff]
        %v544 = vld [vmem:[%s2 + $0x4ac] sm:$0xf]
        %v545 = vld [vmem:[%s2 + $0x4b0] sm:$0xff]
        %v546 = vld [vmem:[%s2 + $0x4b8] sm:$0xf]
        %v547 = vld [vmem:[%s2 + $0x4bc] sm:$0xff]
        %v548 = vld [vmem:[%s2 + $0x4c4] sm:$0xf]
        %v549 = vld [vmem:[%s2 + $0x4c8] sm:$0xff]
        %v550 = vld [vmem:[%s2 + $0x4d0] sm:$0xf]
        %v551 = vld [vmem:[%s2 + $0x4d4] sm:$0xff]
        %v552 = vld [vmem:[%s2 + $0x4dc] sm:$0xf]
        %v553 = vld [vmem:[%s2 + $0x4e0] sm:$0xff]
        %v554 = vld [vmem:[%s2 + $0x4e8] sm:$0xf]
        %v555 = vld [vmem:[%s2 + $0x4ec] sm:$0xff]
        %v556 = vld [vmem:[%s2 + $0x4f4] sm:$0xf]
        %v557 = vld [vmem:[%s2 + $0x4f8] sm:$0xff]
        %v558 = vld [vmem:[%s2 + $0x500] sm:$0xf]
        %v559 = vld [vmem:[%s2 + $0x504] sm:$0xff]
        %v560 = vld [vmem:[%s2 + $0x50c] sm:$0xf]
        %v561 = vld [vmem:[%s2 + $0x510] sm:$0xff]
        %v562 = vld [vmem:[%s2 + $0x518] sm:$0xf]
        %v563 = vld [vmem:[%s2 + $0x51c] sm:$0xff]
        %v564 = vld [vmem:[%s2 + $0x524] sm:$0xf]
        %v565 = vld [vmem:[%s2 + $0x528] sm:$0xff]
        %v566 = vld [vmem:[%s2 + $0x530] sm:$0xf]
        %v567 = vld [vmem:[%s2 + $0x534] sm:$0xff]
        %v568 = vld [vmem:[%s2 + $0x53c] sm:$0xf]
        %v585 = vunpack.c.l.b16 %v329
        %v586 = vunpack.c.h.b16 %v329
        %v587 = vunpack.c.l.b16 %v330
        %v588 = vunpack.c.h.b16 %v330
        %v589 = vunpack.c.l.b16 %v331
        %v590 = vunpack.c.h.b16 %v331
        %v591 = vunpack.c.l.b16 %v332
        %v592 = vunpack.c.l.b16 %v333
        %v593 = vunpack.c.h.b16 %v333
        %v594 = vunpack.c.l.b16 %v334
        %v595 = vunpack.c.h.b16 %v334
        %v596 = vunpack.c.l.b16 %v335
        %v597 = vunpack.c.h.b16 %v335
        %v598 = vunpack.c.l.b16 %v336
        %v599 = vunpack.c.l.b16 %v337
        %v600 = vunpack.c.h.b16 %v337
        %v601 = vunpack.c.l.b16 %v338
        %v602 = vunpack.c.h.b16 %v338
        %v603 = vunpack.c.l.b16 %v339
        %v604 = vunpack.c.h.b16 %v339
        %v605 = vunpack.c.l.b16 %v340
        %v606 = vunpack.c.l.b16 %v341
        %v607 = vunpack.c.h.b16 %v341
        %v608 = vunpack.c.l.b16 %v342
        %v609 = vunpack.c.h.b16 %v342
        %v610 = vunpack.c.l.b16 %v343
        %v611 = vunpack.c.h.b16 %v343
        %v612 = vunpack.c.l.b16 %v344
        %v613 = vpack.c.b16 %v592, %v585
        %v614 = vpack.c.b16 %v593, %v586
        %v615 = vpack.c.b16 %v594, %v587
        %v616 = vpack.c.b16 %v595, %v588
        %v617 = vpack.c.b16 %v596, %v589
        %v618 = vpack.c.b16 %v597, %v590
        %v619 = vpack.c.b16 %v598, %v591
        %v620 = vpack.c.b16 %v606, %v599
        %v621 = vpack.c.b16 %v607, %v600
        %v622 = vpack.c.b16 %v608, %v601
        %v623 = vpack.c.b16 %v609, %v602
        %v624 = vpack.c.b16 %v610, %v603
        %v625 = vpack.c.b16 %v611, %v604
        %v626 = vpack.c.b16 %v612, %v605
        %v865 = vunpack.c.l.b16 %v345
        %v866 = vunpack.c.h.b16 %v345
        %v867 = vunpack.c.l.b16 %v346
        %v868 = vunpack.c.l.b16 %v347
        %v869 = vunpack.c.h.b16 %v347
        %v870 = vunpack.c.l.b16 %v348
        %v871 = vunpack.c.l.b16 %v349
        %v872 = vunpack.c.h.b16 %v349
        %v873 = vunpack.c.l.b16 %v350
        %v874 = vunpack.c.l.b16 %v351
        %v875 = vunpack.c.h.b16 %v351
        %v876 = vunpack.c.l.b16 %v352
        %v877 = vunpack.c.l.b16 %v353
        %v878 = vunpack.c.h.b16 %v353
        %v879 = vunpack.c.l.b16 %v354
        %v880 = vunpack.c.l.b16 %v355
        %v881 = vunpack.c.h.b16 %v355
        %v882 = vunpack.c.l.b16 %v356
        %v883 = vunpack.c.l.b16 %v357
        %v884 = vunpack.c.h.b16 %v357
        %v885 = vunpack.c.l.b16 %v358
        %v886 = vunpack.c.l.b16 %v359
        %v887 = vunpack.c.h.b16 %v359
        %v888 = vunpack.c.l.b16 %v360
        %v889 = vunpack.c.l.b16 %v361
        %v890 = vunpack.c.h.b16 %v361
        %v891 = vunpack.c.l.b16 %v362
        %v892 = vunpack.c.l.b16 %v363
        %v893 = vunpack.c.h.b16 %v363
        %v894 = vunpack.c.l.b16 %v364
        %v895 = vunpack.c.l.b16 %v365
        %v896 = vunpack.c.h.b16 %v365
        %v897 = vunpack.c.l.b16 %v366
        %v898 = vunpack.c.l.b16 %v367
        %v899 = vunpack.c.h.b16 %v367
        %v900 = vunpack.c.l.b16 %v368
        %v901 = vunpack.c.l.b16 %v369
        %v902 = vunpack.c.h.b16 %v369
        %v903 = vunpack.c.l.b16 %v370
        %v904 = vunpack.c.l.b16 %v371
        %v905 = vunpack.c.h.b16 %v371
        %v906 = vunpack.c.l.b16 %v372
        %v907 = vunpack.c.l.b16 %v373
        %v908 = vunpack.c.h.b16 %v373
        %v909 = vunpack.c.l.b16 %v374
        %v910 = vunpack.c.l.b16 %v375
        %v911 = vunpack.c.h.b16 %v375
        %v912 = vunpack.c.l.b16 %v376
        %v913 = vunpack.c.l.b16 %v377
        %v914 = vunpack.c.h.b16 %v377
        %v915 = vunpack.c.l.b16 %v378
        %v916 = vunpack.c.l.b16 %v379
        %v917 = vunpack.c.h.b16 %v379
        %v918 = vunpack.c.l.b16 %v380
        %v919 = vunpack.c.l.b16 %v381
        %v920 = vunpack.c.h.b16 %v381
        %v921 = vunpack.c.l.b16 %v382
        %v922 = vunpack.c.l.b16 %v383
        %v923 = vunpack.c.h.b16 %v383
        %v924 = vunpack.c.l.b16 %v384
        %v925 = vunpack.c.l.b16 %v385
        %v926 = vunpack.c.h.b16 %v385
        %v927 = vunpack.c.l.b16 %v386
        %v928 = vunpack.c.l.b16 %v387
        %v929 = vunpack.c.h.b16 %v387
        %v930 = vunpack.c.l.b16 %v388
        %v931 = vunpack.c.l.b16 %v389
        %v932 = vunpack.c.h.b16 %v389
        %v933 = vunpack.c.l.b16 %v390
        %v934 = vunpack.c.l.b16 %v391
        %v935 = vunpack.c.h.b16 %v391
        %v936 = vunpack.c.l.b16 %v392
        %v937 = vunpack.c.l.b16 %v393
        %v938 = vunpack.c.h.b16 %v393
        %v939 = vunpack.c.l.b16 %v394
        %v940 = vunpack.c.l.b16 %v395
        %v941 = vunpack.c.h.b16 %v395
        %v942 = vunpack.c.l.b16 %v396
        %v943 = vunpack.c.l.b16 %v397
        %v944 = vunpack.c.h.b16 %v397
        %v945 = vunpack.c.l.b16 %v398
        %v946 = vunpack.c.l.b16 %v399
        %v947 = vunpack.c.h.b16 %v399
        %v948 = vunpack.c.l.b16 %v400
        %v949 = vunpack.c.l.b16 %v401
        %v950 = vunpack.c.h.b16 %v401
        %v951 = vunpack.c.l.b16 %v402
        %v952 = vunpack.c.l.b16 %v403
        %v953 = vunpack.c.h.b16 %v403
        %v954 = vunpack.c.l.b16 %v404
        %v955 = vunpack.c.l.b16 %v405
        %v956 = vunpack.c.h.b16 %v405
        %v957 = vunpack.c.l.b16 %v406
        %v958 = vunpack.c.l.b16 %v407
        %v959 = vunpack.c.h.b16 %v407
        %v960 = vunpack.c.l.b16 %v408
        %v961 = vunpack.c.l.b16 %v409
        %v962 = vunpack.c.h.b16 %v409
        %v963 = vunpack.c.l.b16 %v410
        %v964 = vunpack.c.l.b16 %v411
        %v965 = vunpack.c.h.b16 %v411
        %v966 = vunpack.c.l.b16 %v412
        %v967 = vunpack.c.l.b16 %v413
        %v968 = vunpack.c.h.b16 %v413
        %v969 = vunpack.c.l.b16 %v414
        %v970 = vunpack.c.l.b16 %v415
        %v971 = vunpack.c.h.b16 %v415
        %v972 = vunpack.c.l.b16 %v416
        %v973 = vunpack.c.l.b16 %v417
        %v974 = vunpack.c.h.b16 %v417
        %v975 = vunpack.c.l.b16 %v418
        %v976 = vunpack.c.l.b16 %v419
        %v977 = vunpack.c.h.b16 %v419
        %v978 = vunpack.c.l.b16 %v420
        %v979 = vunpack.c.l.b16 %v421
        %v980 = vunpack.c.h.b16 %v421
        %v981 = vunpack.c.l.b16 %v422
        %v982 = vunpack.c.l.b16 %v423
        %v983 = vunpack.c.h.b16 %v423
        %v984 = vunpack.c.l.b16 %v424
        %v985 = vunpack.c.l.b16 %v425
        %v986 = vunpack.c.h.b16 %v425
        %v987 = vunpack.c.l.b16 %v426
        %v988 = vunpack.c.l.b16 %v427
        %v989 = vunpack.c.h.b16 %v427
        %v990 = vunpack.c.l.b16 %v428
        %v991 = vunpack.c.l.b16 %v429
        %v992 = vunpack.c.h.b16 %v429
        %v993 = vunpack.c.l.b16 %v430
        %v994 = vunpack.c.l.b16 %v431
        %v995 = vunpack.c.h.b16 %v431
        %v996 = vunpack.c.l.b16 %v432
        %v997 = vunpack.c.l.b16 %v433
        %v998 = vunpack.c.h.b16 %v433
        %v999 = vunpack.c.l.b16 %v434
        %v1000 = vunpack.c.l.b16 %v435
        %v1001 = vunpack.c.h.b16 %v435
        %v1002 = vunpack.c.l.b16 %v436
        %v1003 = vunpack.c.l.b16 %v437
        %v1004 = vunpack.c.h.b16 %v437
        %v1005 = vunpack.c.l.b16 %v438
        %v1006 = vunpack.c.l.b16 %v439
        %v1007 = vunpack.c.h.b16 %v439
        %v1008 = vunpack.c.l.b16 %v440
        %v1009 = vunpack.c.l.b16 %v441
        %v1010 = vunpack.c.h.b16 %v441
        %v1011 = vunpack.c.l.b16 %v442
        %v1012 = vunpack.c.l.b16 %v443
        %v1013 = vunpack.c.h.b16 %v443
        %v1014 = vunpack.c.l.b16 %v444
        %v1015 = vunpack.c.l.b16 %v445
        %v1016 = vunpack.c.h.b16 %v445
        %v1017 = vunpack.c.l.b16 %v446
        %v1018 = vunpack.c.l.b16 %v447
        %v1019 = vunpack.c.h.b16 %v447
        %v1020 = vunpack.c.l.b16 %v448
        %v1021 = vunpack.c.l.b16 %v449
        %v1022 = vunpack.c.h.b16 %v449
        %v1023 = vunpack.c.l.b16 %v450
        %v1024 = vunpack.c.l.b16 %v451
        %v1025 = vunpack.c.h.b16 %v451
        %v1026 = vunpack.c.l.b16 %v452
        %v1027 = vunpack.c.l.b16 %v453
        %v1028 = vunpack.c.h.b16 %v453
        %v1029 = vunpack.c.l.b16 %v454
        %v1030 = vunpack.c.l.b16 %v455
        %v1031 = vunpack.c.h.b16 %v455
        %v1032 = vunpack.c.l.b16 %v456
        %v1033 = vunpack.c.l.b16 %v457
        %v1034 = vunpack.c.h.b16 %v457
        %v1035 = vunpack.c.l.b16 %v458
        %v1036 = vunpack.c.l.b16 %v459
        %v1037 = vunpack.c.h.b16 %v459
        %v1038 = vunpack.c.l.b16 %v460
        %v1039 = vunpack.c.l.b16 %v461
        %v1040 = vunpack.c.h.b16 %v461
        %v1041 = vunpack.c.l.b16 %v462
        %v1042 = vunpack.c.l.b16 %v463
        %v1043 = vunpack.c.h.b16 %v463
        %v1044 = vunpack.c.l.b16 %v464
        %v1045 = vunpack.c.l.b16 %v465
        %v1046 = vunpack.c.h.b16 %v465
        %v1047 = vunpack.c.l.b16 %v466
        %v1048 = vunpack.c.l.b16 %v467
        %v1049 = vunpack.c.h.b16 %v467
        %v1050 = vunpack.c.l.b16 %v468
        %v1051 = vunpack.c.l.b16 %v469
        %v1052 = vunpack.c.h.b16 %v469
        %v1053 = vunpack.c.l.b16 %v470
        %v1054 = vunpack.c.l.b16 %v471
        %v1055 = vunpack.c.h.b16 %v471
        %v1056 = vunpack.c.l.b16 %v472
        %v1057 = vunpack.c.l.b16 %v473
        %v1058 = vunpack.c.h.b16 %v473
        %v1059 = vunpack.c.l.b16 %v474
        %v1060 = vunpack.c.l.b16 %v475
        %v1061 = vunpack.c.h.b16 %v475
        %v1062 = vunpack.c.l.b16 %v476
        %v1063 = vunpack.c.l.b16 %v477
        %v1064 = vunpack.c.h.b16 %v477
        %v1065 = vunpack.c.l.b16 %v478
        %v1066 = vunpack.c.l.b16 %v479
        %v1067 = vunpack.c.h.b16 %v479
        %v1068 = vunpack.c.l.b16 %v480
        %v1069 = vunpack.c.l.b16 %v481
        %v1070 = vunpack.c.h.b16 %v481
        %v1071 = vunpack.c.l.b16 %v482
        %v1072 = vunpack.c.l.b16 %v483
        %v1073 = vunpack.c.h.b16 %v483
        %v1074 = vunpack.c.l.b16 %v484
        %v1075 = vunpack.c.l.b16 %v485
        %v1076 = vunpack.c.h.b16 %v485
        %v1077 = vunpack.c.l.b16 %v486
        %v1078 = vunpack.c.l.b16 %v487
        %v1079 = vunpack.c.h.b16 %v487
        %v1080 = vunpack.c.l.b16 %v488
        %v1081 = vunpack.c.l.b16 %v489
        %v1082 = vunpack.c.h.b16 %v489
        %v1083 = vunpack.c.l.b16 %v490
        %v1084 = vunpack.c.l.b16 %v491
        %v1085 = vunpack.c.h.b16 %v491
        %v1086 = vunpack.c.l.b16 %v492
        %v1087 = vunpack.c.l.b16 %v493
        %v1088 = vunpack.c.h.b16 %v493
        %v1089 = vunpack.c.l.b16 %v494
        %v1090 = vunpack.c.l.b16 %v495
        %v1091 = vunpack.c.h.b16 %v495
        %v1092 = vunpack.c.l.b16 %v496
        %v1093 = vunpack.c.l.b16 %v497
        %v1094 = vunpack.c.h.b16 %v497
        %v1095 = vunpack.c.l.b16 %v498
        %v1096 = vunpack.c.l.b16 %v499
        %v1097 = vunpack.c.h.b16 %v499
        %v1098 = vunpack.c.l.b16 %v500
        %v1099 = vunpack.c.l.b16 %v501
        %v1100 = vunpack.c.h.b16 %v501
        %v1101 = vunpack.c.l.b16 %v502
        %v1102 = vunpack.c.l.b16 %v503
        %v1103 = vunpack.c.h.b16 %v503
        %v1104 = vunpack.c.l.b16 %v504
        %v1105 = vunpack.c.l.b16 %v505
        %v1106 = vunpack.c.h.b16 %v505
        %v1107 = vunpack.c.l.b16 %v506
        %v1108 = vunpack.c.l.b16 %v507
        %v1109 = vunpack.c.h.b16 %v507
        %v1110 = vunpack.c.l.b16 %v508
        %v1111 = vunpack.c.l.b16 %v509
        %v1112 = vunpack.c.h.b16 %v509
        %v1113 = vunpack.c.l.b16 %v510
        %v1114 = vunpack.c.l.b16 %v511
        %v1115 = vunpack.c.h.b16 %v511
        %v1116 = vunpack.c.l.b16 %v512
        %v1117 = vunpack.c.l.b16 %v513
        %v1118 = vunpack.c.h.b16 %v513
        %v1119 = vunpack.c.l.b16 %v514
        %v1120 = vunpack.c.l.b16 %v515
        %v1121 = vunpack.c.h.b16 %v515
        %v1122 = vunpack.c.l.b16 %v516
        %v1123 = vunpack.c.l.b16 %v517
        %v1124 = vunpack.c.h.b16 %v517
        %v1125 = vunpack.c.l.b16 %v518
        %v1126 = vunpack.c.l.b16 %v519
        %v1127 = vunpack.c.h.b16 %v519
        %v1128 = vunpack.c.l.b16 %v520
        %v1129 = vunpack.c.l.b16 %v521
        %v1130 = vunpack.c.h.b16 %v521
        %v1131 = vunpack.c.l.b16 %v522
        %v1132 = vunpack.c.l.b16 %v523
        %v1133 = vunpack.c.h.b16 %v523
        %v1134 = vunpack.c.l.b16 %v524
        %v1135 = vunpack.c.l.b16 %v525
        %v1136 = vunpack.c.h.b16 %v525
        %v1137 = vunpack.c.l.b16 %v526
        %v1138 = vunpack.c.l.b16 %v527
        %v1139 = vunpack.c.h.b16 %v527
        %v1140 = vunpack.c.l.b16 %v528
        %v1141 = vunpack.c.l.b16 %v529
        %v1142 = vunpack.c.h.b16 %v529
        %v1143 = vunpack.c.l.b16 %v530
        %v1144 = vunpack.c.l.b16 %v531
        %v1145 = vunpack.c.h.b16 %v531
        %v1146 = vunpack.c.l.b16 %v532
        %v1147 = vunpack.c.l.b16 %v533
        %v1148 = vunpack.c.h.b16 %v533
        %v1149 = vunpack.c.l.b16 %v534
        %v1150 = vunpack.c.l.b16 %v535
        %v1151 = vunpack.c.h.b16 %v535
        %v1152 = vunpack.c.l.b16 %v536
        %v1153 = vunpack.c.l.b16 %v537
        %v1154 = vunpack.c.h.b16 %v537
        %v1155 = vunpack.c.l.b16 %v538
        %v1156 = vunpack.c.l.b16 %v539
        %v1157 = vunpack.c.h.b16 %v539
        %v1158 = vunpack.c.l.b16 %v540
        %v1159 = vunpack.c.l.b16 %v541
        %v1160 = vunpack.c.h.b16 %v541
        %v1161 = vunpack.c.l.b16 %v542
        %v1162 = vunpack.c.l.b16 %v543
        %v1163 = vunpack.c.h.b16 %v543
        %v1164 = vunpack.c.l.b16 %v544
        %v1165 = vunpack.c.l.b16 %v545
        %v1166 = vunpack.c.h.b16 %v545
        %v1167 = vunpack.c.l.b16 %v546
        %v1168 = vunpack.c.l.b16 %v547
        %v1169 = vunpack.c.h.b16 %v547
        %v1170 = vunpack.c.l.b16 %v548
        %v1171 = vunpack.c.l.b16 %v549
        %v1172 = vunpack.c.h.b16 %v549
        %v1173 = vunpack.c.l.b16 %v550
        %v1174 = vunpack.c.l.b16 %v551
        %v1175 = vunpack.c.h.b16 %v551
        %v1176 = vunpack.c.l.b16 %v552
        %v1177 = vunpack.c.l.b16 %v553
        %v1178 = vunpack.c.h.b16 %v553
        %v1179 = vunpack.c.l.b16 %v554
        %v1180 = vunpack.c.l.b16 %v555
        %v1181 = vunpack.c.h.b16 %v555
        %v1182 = vunpack.c.l.b16 %v556
        %v1183 = vunpack.c.l.b16 %v557
        %v1184 = vunpack.c.h.b16 %v557
        %v1185 = vunpack.c.l.b16 %v558
        %v1186 = vunpack.c.l.b16 %v559
        %v1187 = vunpack.c.h.b16 %v559
        %v1188 = vunpack.c.l.b16 %v560
        %v1189 = vunpack.c.l.b16 %v561
        %v1190 = vunpack.c.h.b16 %v561
        %v1191 = vunpack.c.l.b16 %v562
        %v1192 = vunpack.c.l.b16 %v563
        %v1193 = vunpack.c.h.b16 %v563
        %v1194 = vunpack.c.l.b16 %v564
        %v1195 = vunpack.c.l.b16 %v565
        %v1196 = vunpack.c.h.b16 %v565
        %v1197 = vunpack.c.l.b16 %v566
        %v1198 = vunpack.c.l.b16 %v567
        %v1199 = vunpack.c.h.b16 %v567
        %v1200 = vunpack.c.l.b16 %v568
        %v1201 = vpack.c.b16 %v868, %v865
        %v1202 = vpack.c.b16 %v869, %v866
        %v1203 = vpack.c.b16 %v870, %v867
        %v1204 = vpack.c.b16 %v874, %v871
        %v1205 = vpack.c.b16 %v875, %v872
        %v1206 = vpack.c.b16 %v876, %v873
        %v1207 = vpack.c.b16 %v880, %v877
        %v1208 = vpack.c.b16 %v881, %v878
        %v1209 = vpack.c.b16 %v882, %v879
        %v1210 = vpack.c.b16 %v886, %v883
        %v1211 = vpack.c.b16 %v887, %v884
        %v1212 = vpack.c.b16 %v888, %v885
        %v1213 = vpack.c.b16 %v892, %v889
        %v1214 = vpack.c.b16 %v893, %v890
        %v1215 = vpack.c.b16 %v894, %v891
        %v1216 = vpack.c.b16 %v898, %v895
        %v1217 = vpack.c.b16 %v899, %v896
        %v1218 = vpack.c.b16 %v900, %v897
        %v1219 = vpack.c.b16 %v904, %v901
        %v1220 = vpack.c.b16 %v905, %v902
        %v1221 = vpack.c.b16 %v906, %v903
        %v1222 = vpack.c.b16 %v910, %v907
        %v1223 = vpack.c.b16 %v911, %v908
        %v1224 = vpack.c.b16 %v912, %v909
        %v1225 = vpack.c.b16 %v916, %v913
        %v1226 = vpack.c.b16 %v917, %v914
        %v1227 = vpack.c.b16 %v918, %v915
        %v1228 = vpack.c.b16 %v922, %v919
        %v1229 = vpack.c.b16 %v923, %v920
        %v1230 = vpack.c.b16 %v924, %v921
        %v1231 = vpack.c.b16 %v928, %v925
        %v1232 = vpack.c.b16 %v929, %v926
        %v1233 = vpack.c.b16 %v930, %v927
        %v1234 = vpack.c.b16 %v934, %v931
        %v1235 = vpack.c.b16 %v935, %v932
        %v1236 = vpack.c.b16 %v936, %v933
        %v1237 = vpack.c.b16 %v940, %v937
        %v1238 = vpack.c.b16 %v941, %v938
        %v1239 = vpack.c.b16 %v942, %v939
        %v1240 = vpack.c.b16 %v946, %v943
        %v1241 = vpack.c.b16 %v947, %v944
        %v1242 = vpack.c.b16 %v948, %v945
        %v1243 = vpack.c.b16 %v952, %v949
        %v1244 = vpack.c.b16 %v953, %v950
        %v1245 = vpack.c.b16 %v954, %v951
        %v1246 = vpack.c.b16 %v958, %v955
        %v1247 = vpack.c.b16 %v959, %v956
        %v1248 = vpack.c.b16 %v960, %v957
        %v1249 = vpack.c.b16 %v964, %v961
        %v1250 = vpack.c.b16 %v965, %v962
        %v1251 = vpack.c.b16 %v966, %v963
        %v1252 = vpack.c.b16 %v970, %v967
        %v1253 = vpack.c.b16 %v971, %v968
        %v1254 = vpack.c.b16 %v972, %v969
        %v1255 = vpack.c.b16 %v976, %v973
        %v1256 = vpack.c.b16 %v977, %v974
        %v1257 = vpack.c.b16 %v978, %v975
        %v1258 = vpack.c.b16 %v982, %v979
        %v1259 = vpack.c.b16 %v983, %v980
        %v1260 = vpack.c.b16 %v984, %v981
        %v1261 = vpack.c.b16 %v988, %v985
        %v1262 = vpack.c.b16 %v989, %v986
        %v1263 = vpack.c.b16 %v990, %v987
        %v1264 = vpack.c.b16 %v994, %v991
        %v1265 = vpack.c.b16 %v995, %v992
        %v1266 = vpack.c.b16 %v996, %v993
        %v1267 = vpack.c.b16 %v1000, %v997
        %v1268 = vpack.c.b16 %v1001, %v998
        %v1269 = vpack.c.b16 %v1002, %v999
        %v1270 = vpack.c.b16 %v1006, %v1003
        %v1271 = vpack.c.b16 %v1007, %v1004
        %v1272 = vpack.c.b16 %v1008, %v1005
        %v1273 = vpack.c.b16 %v1012, %v1009
        %v1274 = vpack.c.b16 %v1013, %v1010
        %v1275 = vpack.c.b16 %v1014, %v1011
        %v1276 = vpack.c.b16 %v1018, %v1015
        %v1277 = vpack.c.b16 %v1019, %v1016
        %v1278 = vpack.c.b16 %v1020, %v1017
        %v1279 = vpack.c.b16 %v1024, %v1021
        %v1280 = vpack.c.b16 %v1025, %v1022
        %v1281 = vpack.c.b16 %v1026, %v1023
        %v1282 = vpack.c.b16 %v1030, %v1027
        %v1283 = vpack.c.b16 %v1031, %v1028
        %v1284 = vpack.c.b16 %v1032, %v1029
        %v1285 = vpack.c.b16 %v1036, %v1033
        %v1286 = vpack.c.b16 %v1037, %v1034
        %v1287 = vpack.c.b16 %v1038, %v1035
        %v1288 = vpack.c.b16 %v1042, %v1039
        %v1289 = vpack.c.b16 %v1043, %v1040
        %v1290 = vpack.c.b16 %v1044, %v1041
        %v1291 = vpack.c.b16 %v1048, %v1045
        %v1292 = vpack.c.b16 %v1049, %v1046
        %v1293 = vpack.c.b16 %v1050, %v1047
        %v1294 = vpack.c.b16 %v1054, %v1051
        %v1295 = vpack.c.b16 %v1055, %v1052
        %v1296 = vpack.c.b16 %v1056, %v1053
        %v1297 = vpack.c.b16 %v1060, %v1057
        %v1298 = vpack.c.b16 %v1061, %v1058
        %v1299 = vpack.c.b16 %v1062, %v1059
        %v1300 = vpack.c.b16 %v1066, %v1063
        %v1301 = vpack.c.b16 %v1067, %v1064
        %v1302 = vpack.c.b16 %v1068, %v1065
        %v1303 = vpack.c.b16 %v1072, %v1069
        %v1304 = vpack.c.b16 %v1073, %v1070
        %v1305 = vpack.c.b16 %v1074, %v1071
        %v1306 = vpack.c.b16 %v1078, %v1075
        %v1307 = vpack.c.b16 %v1079, %v1076
        %v1308 = vpack.c.b16 %v1080, %v1077
        %v1309 = vpack.c.b16 %v1084, %v1081
        %v1310 = vpack.c.b16 %v1085, %v1082
        %v1311 = vpack.c.b16 %v1086, %v1083
        %v1312 = vpack.c.b16 %v1090, %v1087
        %v1313 = vpack.c.b16 %v1091, %v1088
        %v1314 = vpack.c.b16 %v1092, %v1089
        %v1315 = vpack.c.b16 %v1096, %v1093
        %v1316 = vpack.c.b16 %v1097, %v1094
        %v1317 = vpack.c.b16 %v1098, %v1095
        %v1318 = vpack.c.b16 %v1102, %v1099
        %v1319 = vpack.c.b16 %v1103, %v1100
        %v1320 = vpack.c.b16 %v1104, %v1101
        %v1321 = vpack.c.b16 %v1108, %v1105
        %v1322 = vpack.c.b16 %v1109, %v1106
        %v1323 = vpack.c.b16 %v1110, %v1107
        %v1324 = vpack.c.b16 %v1114, %v1111
        %v1325 = vpack.c.b16 %v1115, %v1112
        %v1326 = vpack.c.b16 %v1116, %v1113
        %v1327 = vpack.c.b16 %v1120, %v1117
        %v1328 = vpack.c.b16 %v1121, %v1118
        %v1329 = vpack.c.b16 %v1122, %v1119
        %v1330 = vpack.c.b16 %v1126, %v1123
        %v1331 = vpack.c.b16 %v1127, %v1124
        %v1332 = vpack.c.b16 %v1128, %v1125
        %v1333 = vpack.c.b16 %v1132, %v1129
        %v1334 = vpack.c.b16 %v1133, %v1130
        %v1335 = vpack.c.b16 %v1134, %v1131
        %v1336 = vpack.c.b16 %v1138, %v1135
        %v1337 = vpack.c.b16 %v1139, %v1136
        %v1338 = vpack.c.b16 %v1140, %v1137
        %v1339 = vpack.c.b16 %v1144, %v1141
        %v1340 = vpack.c.b16 %v1145, %v1142
        %v1341 = vpack.c.b16 %v1146, %v1143
        %v1342 = vpack.c.b16 %v1150, %v1147
        %v1343 = vpack.c.b16 %v1151, %v1148
        %v1344 = vpack.c.b16 %v1152, %v1149
        %v1345 = vpack.c.b16 %v1156, %v1153
        %v1346 = vpack.c.b16 %v1157, %v1154
        %v1347 = vpack.c.b16 %v1158, %v1155
        %v1348 = vpack.c.b16 %v1162, %v1159
        %v1349 = vpack.c.b16 %v1163, %v1160
        %v1350 = vpack.c.b16 %v1164, %v1161
        %v1351 = vpack.c.b16 %v1168, %v1165
        %v1352 = vpack.c.b16 %v1169, %v1166
        %v1353 = vpack.c.b16 %v1170, %v1167
        %v1354 = vpack.c.b16 %v1174, %v1171
        %v1355 = vpack.c.b16 %v1175, %v1172
        %v1356 = vpack.c.b16 %v1176, %v1173
        %v1357 = vpack.c.b16 %v1180, %v1177
        %v1358 = vpack.c.b16 %v1181, %v1178
        %v1359 = vpack.c.b16 %v1182, %v1179
        %v1360 = vpack.c.b16 %v1186, %v1183
        %v1361 = vpack.c.b16 %v1187, %v1184
        %v1362 = vpack.c.b16 %v1188, %v1185
        %v1363 = vpack.c.b16 %v1192, %v1189
        %v1364 = vpack.c.b16 %v1193, %v1190
        %v1365 = vpack.c.b16 %v1194, %v1191
        %v1366 = vpack.c.b16 %v1198, %v1195
        %v1367 = vpack.c.b16 %v1199, %v1196
        %v1368 = vpack.c.b16 %v1200, %v1197
        %1537 = vmatpush.bf16.msra.mxu0 %v1222
        %1538 = vmatpush.bf16.msra.mxu0 %v1219
        %1539 = vmatpush.bf16.msra.mxu0 %v1216
        %1540 = vmatpush.bf16.msra.mxu0 %v1213
        %1541 = vmatpush.bf16.msra.mxu0 %v1210
        %1542 = vmatpush.bf16.msra.mxu0 %v1207
        %1543 = vmatpush.bf16.msra.mxu0 %v1204
        %1544 = vmatpush.bf16.msra.mxu0 %v1201
        %1545 = vmatmul.bf16.gmra.mxu0 %v613
        %v1546 = vpop.f32.mrf.mxu0
        %v1547 = vadd.f32 0.0, %v1546
        %v1548 = vpop.f32.mrf.mxu0
        %v1549 = vadd.f32 0.0, %v1548
        %1550 = vmatmul.bf16.gmra.mxu0 %v620
        %v1551 = vpop.f32.mrf.mxu0
        %v1552 = vadd.f32 0.0, %v1551
        %v1553 = vpop.f32.mrf.mxu0
        %v1554 = vadd.f32 0.0, %v1553
        %1555 = vdwg.mxu0
        %1556 = vmatpush.bf16.msra.mxu0 %v1246
        %1557 = vmatpush.bf16.msra.mxu0 %v1243
        %1558 = vmatpush.bf16.msra.mxu0 %v1240
        %1559 = vmatpush.bf16.msra.mxu0 %v1237
        %1560 = vmatpush.bf16.msra.mxu0 %v1234
        %1561 = vmatpush.bf16.msra.mxu0 %v1231
        %1562 = vmatpush.bf16.msra.mxu0 %v1228
        %1563 = vmatpush.bf16.msra.mxu0 %v1225
        %1564 = vmatmul.bf16.gmra.mxu0 %v614
        %v1565 = vpop.f32.mrf.mxu0
        %v1566 = vadd.f32 %v1547, %v1565
        %v1567 = vpop.f32.mrf.mxu0
        %v1568 = vadd.f32 %v1549, %v1567
        %1569 = vmatmul.bf16.gmra.mxu0 %v621
        %v1570 = vpop.f32.mrf.mxu0
        %v1571 = vadd.f32 %v1552, %v1570
        %v1572 = vpop.f32.mrf.mxu0
        %v1573 = vadd.f32 %v1554, %v1572
        %1574 = vdwg.mxu0
        %1575 = vmatpush.bf16.msra.mxu0 %v1270
        %1576 = vmatpush.bf16.msra.mxu0 %v1267
        %1577 = vmatpush.bf16.msra.mxu0 %v1264
        %1578 = vmatpush.bf16.msra.mxu0 %v1261
        %1579 = vmatpush.bf16.msra.mxu0 %v1258
        %1580 = vmatpush.bf16.msra.mxu0 %v1255
        %1581 = vmatpush.bf16.msra.mxu0 %v1252
        %1582 = vmatpush.bf16.msra.mxu0 %v1249
        %1583 = vmatmul.bf16.gmra.mxu0 %v615
        %v1584 = vpop.f32.mrf.mxu0
        %v1585 = vadd.f32 %v1566, %v1584
        %v1586 = vpop.f32.mrf.mxu0
        %v1587 = vadd.f32 %v1568, %v1586
        %1588 = vmatmul.bf16.gmra.mxu0 %v622
        %v1589 = vpop.f32.mrf.mxu0
        %v1590 = vadd.f32 %v1571, %v1589
        %v1591 = vpop.f32.mrf.mxu0
        %v1592 = vadd.f32 %v1573, %v1591
        %1593 = vdwg.mxu0
        %1594 = vmatpush.bf16.msra.mxu0 %v1294
        %1595 = vmatpush.bf16.msra.mxu0 %v1291
        %1596 = vmatpush.bf16.msra.mxu0 %v1288
        %1597 = vmatpush.bf16.msra.mxu0 %v1285
        %1598 = vmatpush.bf16.msra.mxu0 %v1282
        %1599 = vmatpush.bf16.msra.mxu0 %v1279
        %1600 = vmatpush.bf16.msra.mxu0 %v1276
        %1601 = vmatpush.bf16.msra.mxu0 %v1273
        %1602 = vmatmul.bf16.gmra.mxu0 %v616
        %v1603 = vpop.f32.mrf.mxu0
        %v1604 = vadd.f32 %v1585, %v1603
        %v1605 = vpop.f32.mrf.mxu0
        %v1606 = vadd.f32 %v1587, %v1605
        %1607 = vmatmul.bf16.gmra.mxu0 %v623
        %v1608 = vpop.f32.mrf.mxu0
        %v1609 = vadd.f32 %v1590, %v1608
        %v1610 = vpop.f32.mrf.mxu0
        %v1611 = vadd.f32 %v1592, %v1610
        %1612 = vdwg.mxu0
        %1613 = vmatpush.bf16.msra.mxu0 %v1318
        %1614 = vmatpush.bf16.msra.mxu0 %v1315
        %1615 = vmatpush.bf16.msra.mxu0 %v1312
        %1616 = vmatpush.bf16.msra.mxu0 %v1309
        %1617 = vmatpush.bf16.msra.mxu0 %v1306
        %1618 = vmatpush.bf16.msra.mxu0 %v1303
        %1619 = vmatpush.bf16.msra.mxu0 %v1300
        %1620 = vmatpush.bf16.msra.mxu0 %v1297
        %1621 = vmatmul.bf16.gmra.mxu0 %v617
        %v1622 = vpop.f32.mrf.mxu0
        %v1623 = vadd.f32 %v1604, %v1622
        %v1624 = vpop.f32.mrf.mxu0
        %v1625 = vadd.f32 %v1606, %v1624
        %1626 = vmatmul.bf16.gmra.mxu0 %v624
        %v1627 = vpop.f32.mrf.mxu0
        %v1628 = vadd.f32 %v1609, %v1627
        %v1629 = vpop.f32.mrf.mxu0
        %v1630 = vadd.f32 %v1611, %v1629
        %1631 = vdwg.mxu0
        %1632 = vmatpush.bf16.msra.mxu0 %v1342
        %1633 = vmatpush.bf16.msra.mxu0 %v1339
        %1634 = vmatpush.bf16.msra.mxu0 %v1336
        %1635 = vmatpush.bf16.msra.mxu0 %v1333
        %1636 = vmatpush.bf16.msra.mxu0 %v1330
        %1637 = vmatpush.bf16.msra.mxu0 %v1327
        %1638 = vmatpush.bf16.msra.mxu0 %v1324
        %1639 = vmatpush.bf16.msra.mxu0 %v1321
        %1640 = vmatmul.bf16.gmra.mxu0 %v618
        %v1641 = vpop.f32.mrf.mxu0
        %v1642 = vadd.f32 %v1623, %v1641
        %v1643 = vpop.f32.mrf.mxu0
        %v1644 = vadd.f32 %v1625, %v1643
        %1645 = vmatmul.bf16.gmra.mxu0 %v625
        %v1646 = vpop.f32.mrf.mxu0
        %v1647 = vadd.f32 %v1628, %v1646
        %v1648 = vpop.f32.mrf.mxu0
        %v1649 = vadd.f32 %v1630, %v1648
        %1650 = vdwg.mxu0
        %1651 = vmatpush.bf16.msra.mxu0 %v1366
        %1652 = vmatpush.bf16.msra.mxu0 %v1363
        %1653 = vmatpush.bf16.msra.mxu0 %v1360
        %1654 = vmatpush.bf16.msra.mxu0 %v1357
        %1655 = vmatpush.bf16.msra.mxu0 %v1354
        %1656 = vmatpush.bf16.msra.mxu0 %v1351
        %1657 = vmatpush.bf16.msra.mxu0 %v1348
        %1658 = vmatpush.bf16.msra.mxu0 %v1345
        %1659 = vmatmul.bf16.gmra.mxu0 %v619
        %v1660 = vpop.f32.mrf.mxu0
        %v1661 = vadd.f32 %v1642, %v1660
        %v1662 = vpop.f32.mrf.mxu0
        %v1663 = vadd.f32 %v1644, %v1662
        %1664 = vmatmul.bf16.gmra.mxu0 %v626
        %v1665 = vpop.f32.mrf.mxu0
        %v1666 = vadd.f32 %v1647, %v1665
        %v1667 = vpop.f32.mrf.mxu0
        %v1668 = vadd.f32 %v1649, %v1667
        %1669 = vdwg.mxu0
        %1670 = vmatpush.bf16.msra.mxu0 %v1223
        %1671 = vmatpush.bf16.msra.mxu0 %v1220
        %1672 = vmatpush.bf16.msra.mxu0 %v1217
        %1673 = vmatpush.bf16.msra.mxu0 %v1214
        %1674 = vmatpush.bf16.msra.mxu0 %v1211
        %1675 = vmatpush.bf16.msra.mxu0 %v1208
        %1676 = vmatpush.bf16.msra.mxu0 %v1205
        %1677 = vmatpush.bf16.msra.mxu0 %v1202
        %1678 = vmatmul.bf16.gmra.mxu0 %v613
        %v1679 = vpop.f32.mrf.mxu0
        %v1680 = vadd.f32 0.0, %v1679
        %v1681 = vpop.f32.mrf.mxu0
        %v1682 = vadd.f32 0.0, %v1681
        %1683 = vmatmul.bf16.gmra.mxu0 %v620
        %v1684 = vpop.f32.mrf.mxu0
        %v1685 = vadd.f32 0.0, %v1684
        %v1686 = vpop.f32.mrf.mxu0
        %v1687 = vadd.f32 0.0, %v1686
        %1688 = vdwg.mxu0
        %1689 = vmatpush.bf16.msra.mxu0 %v1247
        %1690 = vmatpush.bf16.msra.mxu0 %v1244
        %1691 = vmatpush.bf16.msra.mxu0 %v1241
        %1692 = vmatpush.bf16.msra.mxu0 %v1238
        %1693 = vmatpush.bf16.msra.mxu0 %v1235
        %1694 = vmatpush.bf16.msra.mxu0 %v1232
        %1695 = vmatpush.bf16.msra.mxu0 %v1229
        %1696 = vmatpush.bf16.msra.mxu0 %v1226
        %1697 = vmatmul.bf16.gmra.mxu0 %v614
        %v1698 = vpop.f32.mrf.mxu0
        %v1699 = vadd.f32 %v1680, %v1698
        %v1700 = vpop.f32.mrf.mxu0
        %v1701 = vadd.f32 %v1682, %v1700
        %1702 = vmatmul.bf16.gmra.mxu0 %v621
        %v1703 = vpop.f32.mrf.mxu0
        %v1704 = vadd.f32 %v1685, %v1703
        %v1705 = vpop.f32.mrf.mxu0
        %v1706 = vadd.f32 %v1687, %v1705
        %1707 = vdwg.mxu0
        %1708 = vmatpush.bf16.msra.mxu0 %v1271
        %1709 = vmatpush.bf16.msra.mxu0 %v1268
        %1710 = vmatpush.bf16.msra.mxu0 %v1265
        %1711 = vmatpush.bf16.msra.mxu0 %v1262
        %1712 = vmatpush.bf16.msra.mxu0 %v1259
        %1713 = vmatpush.bf16.msra.mxu0 %v1256
        %1714 = vmatpush.bf16.msra.mxu0 %v1253
        %1715 = vmatpush.bf16.msra.mxu0 %v1250
        %1716 = vmatmul.bf16.gmra.mxu0 %v615
        %v1717 = vpop.f32.mrf.mxu0
        %v1718 = vadd.f32 %v1699, %v1717
        %v1719 = vpop.f32.mrf.mxu0
        %v1720 = vadd.f32 %v1701, %v1719
        %1721 = vmatmul.bf16.gmra.mxu0 %v622
        %v1722 = vpop.f32.mrf.mxu0
        %v1723 = vadd.f32 %v1704, %v1722
        %v1724 = vpop.f32.mrf.mxu0
        %v1725 = vadd.f32 %v1706, %v1724
        %1726 = vdwg.mxu0
        %1727 = vmatpush.bf16.msra.mxu0 %v1295
        %1728 = vmatpush.bf16.msra.mxu0 %v1292
        %1729 = vmatpush.bf16.msra.mxu0 %v1289
        %1730 = vmatpush.bf16.msra.mxu0 %v1286
        %1731 = vmatpush.bf16.msra.mxu0 %v1283
        %1732 = vmatpush.bf16.msra.mxu0 %v1280
        %1733 = vmatpush.bf16.msra.mxu0 %v1277
        %1734 = vmatpush.bf16.msra.mxu0 %v1274
        %1735 = vmatmul.bf16.gmra.mxu0 %v616
        %v1736 = vpop.f32.mrf.mxu0
        %v1737 = vadd.f32 %v1718, %v1736
        %v1738 = vpop.f32.mrf.mxu0
        %v1739 = vadd.f32 %v1720, %v1738
        %1740 = vmatmul.bf16.gmra.mxu0 %v623
        %v1741 = vpop.f32.mrf.mxu0
        %v1742 = vadd.f32 %v1723, %v1741
        %v1743 = vpop.f32.mrf.mxu0
        %v1744 = vadd.f32 %v1725, %v1743
        %1745 = vdwg.mxu0
        %1746 = vmatpush.bf16.msra.mxu0 %v1319
        %1747 = vmatpush.bf16.msra.mxu0 %v1316
        %1748 = vmatpush.bf16.msra.mxu0 %v1313
        %1749 = vmatpush.bf16.msra.mxu0 %v1310
        %1750 = vmatpush.bf16.msra.mxu0 %v1307
        %1751 = vmatpush.bf16.msra.mxu0 %v1304
        %1752 = vmatpush.bf16.msra.mxu0 %v1301
        %1753 = vmatpush.bf16.msra.mxu0 %v1298
        %1754 = vmatmul.bf16.gmra.mxu0 %v617
        %v1755 = vpop.f32.mrf.mxu0
        %v1756 = vadd.f32 %v1737, %v1755
        %v1757 = vpop.f32.mrf.mxu0
        %v1758 = vadd.f32 %v1739, %v1757
        %1759 = vmatmul.bf16.gmra.mxu0 %v624
        %v1760 = vpop.f32.mrf.mxu0
        %v1761 = vadd.f32 %v1742, %v1760
        %v1762 = vpop.f32.mrf.mxu0
        %v1763 = vadd.f32 %v1744, %v1762
        %1764 = vdwg.mxu0
        %1765 = vmatpush.bf16.msra.mxu0 %v1343
        %1766 = vmatpush.bf16.msra.mxu0 %v1340
        %1767 = vmatpush.bf16.msra.mxu0 %v1337
        %1768 = vmatpush.bf16.msra.mxu0 %v1334
        %1769 = vmatpush.bf16.msra.mxu0 %v1331
        %1770 = vmatpush.bf16.msra.mxu0 %v1328
        %1771 = vmatpush.bf16.msra.mxu0 %v1325
        %1772 = vmatpush.bf16.msra.mxu0 %v1322
        %1773 = vmatmul.bf16.gmra.mxu0 %v618
        %v1774 = vpop.f32.mrf.mxu0
        %v1775 = vadd.f32 %v1756, %v1774
        %v1776 = vpop.f32.mrf.mxu0
        %v1777 = vadd.f32 %v1758, %v1776
        %1778 = vmatmul.bf16.gmra.mxu0 %v625
        %v1779 = vpop.f32.mrf.mxu0
        %v1780 = vadd.f32 %v1761, %v1779
        %v1781 = vpop.f32.mrf.mxu0
        %v1782 = vadd.f32 %v1763, %v1781
        %1783 = vdwg.mxu0
        %1784 = vmatpush.bf16.msra.mxu0 %v1367
        %1785 = vmatpush.bf16.msra.mxu0 %v1364
        %1786 = vmatpush.bf16.msra.mxu0 %v1361
        %1787 = vmatpush.bf16.msra.mxu0 %v1358
        %1788 = vmatpush.bf16.msra.mxu0 %v1355
        %1789 = vmatpush.bf16.msra.mxu0 %v1352
        %1790 = vmatpush.bf16.msra.mxu0 %v1349
        %1791 = vmatpush.bf16.msra.mxu0 %v1346
        %1792 = vmatmul.bf16.gmra.mxu0 %v619
        %v1793 = vpop.f32.mrf.mxu0
        %v1794 = vadd.f32 %v1775, %v1793
        %v1795 = vpop.f32.mrf.mxu0
        %v1796 = vadd.f32 %v1777, %v1795
        %1797 = vmatmul.bf16.gmra.mxu0 %v626
        %v1798 = vpop.f32.mrf.mxu0
        %v1799 = vadd.f32 %v1780, %v1798
        %v1800 = vpop.f32.mrf.mxu0
        %v1801 = vadd.f32 %v1782, %v1800
        %1802 = vdwg.mxu0
        %1803 = vmatpush.bf16.msra.mxu0 %v1224
        %1804 = vmatpush.bf16.msra.mxu0 %v1221
        %1805 = vmatpush.bf16.msra.mxu0 %v1218
        %1806 = vmatpush.bf16.msra.mxu0 %v1215
        %1807 = vmatpush.bf16.msra.mxu0 %v1212
        %1808 = vmatpush.bf16.msra.mxu0 %v1209
        %1809 = vmatpush.bf16.msra.mxu0 %v1206
        %1810 = vmatpush.bf16.msra.mxu0 %v1203
        %1811 = vmatmul.bf16.gmra.mxu0 %v613
        %v1812 = vpop.f32.mrf.mxu0
        %v1813 = vadd.f32 0.0, %v1812
        %v1814 = vpop.f32.mrf.mxu0
        %v1815 = vadd.f32 0.0, %v1814
        %1816 = vmatmul.bf16.gmra.mxu0 %v620
        %v1817 = vpop.f32.mrf.mxu0
        %v1818 = vadd.f32 0.0, %v1817
        %v1819 = vpop.f32.mrf.mxu0
        %v1820 = vadd.f32 0.0, %v1819
        %1821 = vdwg.mxu0
        %1822 = vmatpush.bf16.msra.mxu0 %v1248
        %1823 = vmatpush.bf16.msra.mxu0 %v1245
        %1824 = vmatpush.bf16.msra.mxu0 %v1242
        %1825 = vmatpush.bf16.msra.mxu0 %v1239
        %1826 = vmatpush.bf16.msra.mxu0 %v1236
        %1827 = vmatpush.bf16.msra.mxu0 %v1233
        %1828 = vmatpush.bf16.msra.mxu0 %v1230
        %1829 = vmatpush.bf16.msra.mxu0 %v1227
        %1830 = vmatmul.bf16.gmra.mxu0 %v614
        %v1831 = vpop.f32.mrf.mxu0
        %v1832 = vadd.f32 %v1813, %v1831
        %v1833 = vpop.f32.mrf.mxu0
        %v1834 = vadd.f32 %v1815, %v1833
        %1835 = vmatmul.bf16.gmra.mxu0 %v621
        %v1836 = vpop.f32.mrf.mxu0
        %v1837 = vadd.f32 %v1818, %v1836
        %v1838 = vpop.f32.mrf.mxu0
        %v1839 = vadd.f32 %v1820, %v1838
        %1840 = vdwg.mxu0
        %1841 = vmatpush.bf16.msra.mxu0 %v1272
        %1842 = vmatpush.bf16.msra.mxu0 %v1269
        %1843 = vmatpush.bf16.msra.mxu0 %v1266
        %1844 = vmatpush.bf16.msra.mxu0 %v1263
        %1845 = vmatpush.bf16.msra.mxu0 %v1260
        %1846 = vmatpush.bf16.msra.mxu0 %v1257
        %1847 = vmatpush.bf16.msra.mxu0 %v1254
        %1848 = vmatpush.bf16.msra.mxu0 %v1251
        %1849 = vmatmul.bf16.gmra.mxu0 %v615
        %v1850 = vpop.f32.mrf.mxu0
        %v1851 = vadd.f32 %v1832, %v1850
        %v1852 = vpop.f32.mrf.mxu0
        %v1853 = vadd.f32 %v1834, %v1852
        %1854 = vmatmul.bf16.gmra.mxu0 %v622
        %v1855 = vpop.f32.mrf.mxu0
        %v1856 = vadd.f32 %v1837, %v1855
        %v1857 = vpop.f32.mrf.mxu0
        %v1858 = vadd.f32 %v1839, %v1857
        %1859 = vdwg.mxu0
        %1860 = vmatpush.bf16.msra.mxu0 %v1296
        %1861 = vmatpush.bf16.msra.mxu0 %v1293
        %1862 = vmatpush.bf16.msra.mxu0 %v1290
        %1863 = vmatpush.bf16.msra.mxu0 %v1287
        %1864 = vmatpush.bf16.msra.mxu0 %v1284
        %1865 = vmatpush.bf16.msra.mxu0 %v1281
        %1866 = vmatpush.bf16.msra.mxu0 %v1278
        %1867 = vmatpush.bf16.msra.mxu0 %v1275
        %1868 = vmatmul.bf16.gmra.mxu0 %v616
        %v1869 = vpop.f32.mrf.mxu0
        %v1870 = vadd.f32 %v1851, %v1869
        %v1871 = vpop.f32.mrf.mxu0
        %v1872 = vadd.f32 %v1853, %v1871
        %1873 = vmatmul.bf16.gmra.mxu0 %v623
        %v1874 = vpop.f32.mrf.mxu0
        %v1875 = vadd.f32 %v1856, %v1874
        %v1876 = vpop.f32.mrf.mxu0
        %v1877 = vadd.f32 %v1858, %v1876
        %1878 = vdwg.mxu0
        %1879 = vmatpush.bf16.msra.mxu0 %v1320
        %1880 = vmatpush.bf16.msra.mxu0 %v1317
        %1881 = vmatpush.bf16.msra.mxu0 %v1314
        %1882 = vmatpush.bf16.msra.mxu0 %v1311
        %1883 = vmatpush.bf16.msra.mxu0 %v1308
        %1884 = vmatpush.bf16.msra.mxu0 %v1305
        %1885 = vmatpush.bf16.msra.mxu0 %v1302
        %1886 = vmatpush.bf16.msra.mxu0 %v1299
        %1887 = vmatmul.bf16.gmra.mxu0 %v617
        %v1888 = vpop.f32.mrf.mxu0
        %v1889 = vadd.f32 %v1870, %v1888
        %v1890 = vpop.f32.mrf.mxu0
        %v1891 = vadd.f32 %v1872, %v1890
        %1892 = vmatmul.bf16.gmra.mxu0 %v624
        %v1893 = vpop.f32.mrf.mxu0
        %v1894 = vadd.f32 %v1875, %v1893
        %v1895 = vpop.f32.mrf.mxu0
        %v1896 = vadd.f32 %v1877, %v1895
        %1897 = vdwg.mxu0
        %1898 = vmatpush.bf16.msra.mxu0 %v1344
        %1899 = vmatpush.bf16.msra.mxu0 %v1341
        %1900 = vmatpush.bf16.msra.mxu0 %v1338
        %1901 = vmatpush.bf16.msra.mxu0 %v1335
        %1902 = vmatpush.bf16.msra.mxu0 %v1332
        %1903 = vmatpush.bf16.msra.mxu0 %v1329
        %1904 = vmatpush.bf16.msra.mxu0 %v1326
        %1905 = vmatpush.bf16.msra.mxu0 %v1323
        %1906 = vmatmul.bf16.gmra.mxu0 %v618
        %v1907 = vpop.f32.mrf.mxu0
        %v1908 = vadd.f32 %v1889, %v1907
        %v1909 = vpop.f32.mrf.mxu0
        %v1910 = vadd.f32 %v1891, %v1909
        %1911 = vmatmul.bf16.gmra.mxu0 %v625
        %v1912 = vpop.f32.mrf.mxu0
        %v1913 = vadd.f32 %v1894, %v1912
        %v1914 = vpop.f32.mrf.mxu0
        %v1915 = vadd.f32 %v1896, %v1914
        %1916 = vdwg.mxu0
        %1917 = vmatpush.bf16.msra.mxu0 %v1368
        %1918 = vmatpush.bf16.msra.mxu0 %v1365
        %1919 = vmatpush.bf16.msra.mxu0 %v1362
        %1920 = vmatpush.bf16.msra.mxu0 %v1359
        %1921 = vmatpush.bf16.msra.mxu0 %v1356
        %1922 = vmatpush.bf16.msra.mxu0 %v1353
        %1923 = vmatpush.bf16.msra.mxu0 %v1350
        %1924 = vmatpush.bf16.msra.mxu0 %v1347
        %1925 = vmatmul.bf16.gmra.mxu0 %v619
        %v1926 = vpop.f32.mrf.mxu0
        %v1927 = vadd.f32 %v1908, %v1926
        %v1928 = vpop.f32.mrf.mxu0
        %v1929 = vadd.f32 %v1910, %v1928
        %1930 = vmatmul.bf16.gmra.mxu0 %v626
        %v1931 = vpop.f32.mrf.mxu0
        %v1932 = vadd.f32 %v1913, %v1931
        %v1933 = vpop.f32.mrf.mxu0
        %v1934 = vadd.f32 %v1915, %v1933
        %1935 = vdwg.mxu0
        %1936 = vst [vmem:[#allocation2] sm:$0xff] %v1661
        %1937 = vst [vmem:[#allocation2 + $0x8] sm:$0xff] %v1663
        %1938 = vst [vmem:[#allocation2 + $0x10] sm:$0xff] %v1666
        %1939 = vst [vmem:[#allocation2 + $0x18] sm:$0xff] %v1668
        %s1940 = scalar_lea.vmem [#allocation2], 32
        %1941 = vst [vmem:[%s1940] sm:$0xff] %v1794
        %1942 = vst [vmem:[%s1940 + $0x8] sm:$0xff] %v1796
        %1943 = vst [vmem:[%s1940 + $0x10] sm:$0xff] %v1799
        %1944 = vst [vmem:[%s1940 + $0x18] sm:$0xff] %v1801
        %s1945 = scalar_lea.vmem [#allocation2], 64
        %1946 = vst [vmem:[%s1945] sm:$0xff] %v1927
        %1947 = vst [vmem:[%s1945 + $0x8] sm:$0xff] %v1929
        %1948 = vst [vmem:[%s1945 + $0x10] sm:$0xff] %v1932
        %1949 = vst [vmem:[%s1945 + $0x18] sm:$0xff] %v1934
        %1950 = vst [vmem:[#allocation3] sm:$0xff] 0.0
        %1951 = vst [vmem:[#allocation3 + $0x8] sm:$0xff] 0.0
        %1952 = vst [vmem:[#allocation3 + $0x10] sm:$0x3f] 0.0
        %1953 = vst [vmem:[#allocation3 + $0x18] sm:$0xff] 0.0
        %1954 = vst [vmem:[#allocation3 + $0x20] sm:$0xff] 0.0
        %1955 = vst [vmem:[#allocation3 + $0x28] sm:$0x3f] 0.0
        %1956 = vst [vmem:[#allocation4] sm:$0xff] 0.0
        %1957 = vst [vmem:[#allocation4 + $0x8] sm:$0xff] 0.0
        %1958 = vst [vmem:[#allocation4 + $0x10] sm:$0xff] 0.0
        %1959 = vst [vmem:[#allocation4 + $0x18] sm:$0xff] 0.0
      $region56: #{basic_block_search_forward.1} parent=51 // pred_fallthru
        _
      %s1960 = smul.u32 %s19, 32
      %s1961 = scalar_lea.vmem [#allocation2], %s1960
      %v1962 = vld [vmem:[%s1961] sm:$0xff]
      %v1963 = vld [vmem:[%s1961 + $0x8] sm:$0xff]
      %v1964 = vld [vmem:[%s1961 + $0x10] sm:$0xff]
      %v1965 = vld [vmem:[%s1961 + $0x18] sm:$0xff]
      %v1966 = vld [vmem:[%s3] sm:$0xff]
      %v1967 = vld [vmem:[%s3 + $0x8] sm:$0xff]
      %v1968 = vld [vmem:[%s3 + $0x10] sm:$0xff]
      %v1969 = vld [vmem:[%s3 + $0x18] sm:$0xff]
      %v1970 = vld [vmem:[%s3 + $0x20] sm:$0xff]
      %v1971 = vld [vmem:[%s3 + $0x28] sm:$0xff]
      %v1972 = vld [vmem:[%s3 + $0x30] sm:$0xff]
      %v1973 = vld [vmem:[%s3 + $0x38] sm:$0xff]
      %v1974 = vld [vmem:[%s3 + $0x40] sm:$0xff]
      %v1975 = vld [vmem:[%s3 + $0x48] sm:$0xff]
      %v1976 = vld [vmem:[%s3 + $0x50] sm:$0xff]
      %v1977 = vld [vmem:[%s3 + $0x58] sm:$0xff]
      %v1978 = vld [vmem:[%s3 + $0x60] sm:$0xff]
      %v1979 = vld [vmem:[%s3 + $0x68] sm:$0xff]
      %v1980 = vld [vmem:[%s3 + $0x70] sm:$0xff]
      %v1981 = vld [vmem:[%s3 + $0x78] sm:$0xff]
      %v1982 = vld [vmem:[%s320] sm:$0x1]
      %v1983 = vld [vmem:[%s320 + $0x1] sm:$0x1]
      %v1984 = vadd.f32 %v1962, %v1963
      %v1985 = vadd.f32 %v1984, %v1964
      %v1986 = vadd.f32 %v1985, %v1965
      %v1987 = vrot.slane %v1986, 4
      %v1988 = vadd.f32 %v1986, %v1987
      %v1989 = vrot.slane %v1988, 2
      %v1990 = vadd.f32 %v1988, %v1989
      %v1991 = vrot.slane %v1990, 1
      %v1992 = vadd.f32 %v1990, %v1991
      %v1993 = vmul.f32 %v1962, %v1962
      %v1994 = vmul.f32 %v1963, %v1963
      %v1995 = vmul.f32 %v1964, %v1964
      %v1996 = vmul.f32 %v1965, %v1965
      %v1997 = vadd.f32 %v1993, %v1994
      %v1998 = vadd.f32 %v1997, %v1995
      %v1999 = vadd.f32 %v1998, %v1996
      %v2000 = vrot.slane %v1999, 4
      %v2001 = vadd.f32 %v1999, %v2000
      %v2002 = vrot.slane %v2001, 2
      %v2003 = vadd.f32 %v2001, %v2002
      %v2004 = vrot.slane %v2003, 1
      %v2005 = vadd.f32 %v2003, %v2004
      %2006 = vmatpush.msra.mxu0 %v1981
      %2007 = vmatpush.msra.mxu0 %v1980
      %2008 = vmatpush.msra.mxu0 %v1979
      %2009 = vmatpush.msra.mxu0 %v1978
      %2010 = vmatpush.msra.mxu0 %v1977
      %2011 = vmatpush.msra.mxu0 %v1976
      %2012 = vmatpush.msra.mxu0 %v1975
      %2013 = vmatpush.msra.mxu0 %v1974
      %2014 = vmatpush.msra.mxu0 %v1973
      %2015 = vmatpush.msra.mxu0 %v1972
      %2016 = vmatpush.msra.mxu0 %v1971
      %2017 = vmatpush.msra.mxu0 %v1970
      %2018 = vmatpush.msra.mxu0 %v1969
      %2019 = vmatpush.msra.mxu0 %v1968
      %2020 = vmatpush.msra.mxu0 %v1967
      %2021 = vmatpush.msra.mxu0 %v1966
      %2022 = vmatmul.f32.gmra.mxu0 %v1992
      %v2023 = vpop.f32.mrf.mxu0
      %v2024 = vadd.f32 0.0, %v2023
      %2025 = vdwg.mxu0
      %v2026 = vmul.f32 %v2024, 0.001953125
      %2027 = vmatpush.msra.mxu0 %v1981
      %2028 = vmatpush.msra.mxu0 %v1980
      %2029 = vmatpush.msra.mxu0 %v1979
      %2030 = vmatpush.msra.mxu0 %v1978
      %2031 = vmatpush.msra.mxu0 %v1977
      %2032 = vmatpush.msra.mxu0 %v1976
      %2033 = vmatpush.msra.mxu0 %v1975
      %2034 = vmatpush.msra.mxu0 %v1974
      %2035 = vmatpush.msra.mxu0 %v1973
      %2036 = vmatpush.msra.mxu0 %v1972
      %2037 = vmatpush.msra.mxu0 %v1971
      %2038 = vmatpush.msra.mxu0 %v1970
      %2039 = vmatpush.msra.mxu0 %v1969
      %2040 = vmatpush.msra.mxu0 %v1968
      %2041 = vmatpush.msra.mxu0 %v1967
      %2042 = vmatpush.msra.mxu0 %v1966
      %2043 = vmatmul.f32.gmra.mxu0 %v2005
      %v2044 = vpop.f32.mrf.mxu0
      %v2045 = vadd.f32 0.0, %v2044
      %2046 = vdwg.mxu0
      %v2047 = vmul.f32 %v2045, 0.001953125
      %v2048 = vmul.f32 %v2026, %v2026
      %v2049 = vsub.f32 %v2047, %v2048
      %v2050 = vadd.f32 %v2049, 1e-05
      %v2051 = vrsqrt.pop %v2050
      %v2052 = vmul.f32 %v2051, %v2050
      %v2053 = vmul.f32 %v2052, %v2051
      %v2054 = vmul.f32 0.5, %v2053
      %v2055 = vsub.f32 1.5, %v2054
      %v2056 = vmul.f32 %v2051, %v2055
      %vm2057 = vweird.f32 %v2050
      %vm2058 = vweird.f32 %v2051
      %vm2059 = vmor %vm2057, %vm2058
      %v2060 = vsel %vm2059, %v2051, %v2056
      %v2061 = vmul.f32 %v2060, %v1982
      %v2062 = vperm.slane %v2026, 0
      %v2063 = vsub.f32 %v1962, %v2062
      %v2064 = vsub.f32 %v1963, %v2062
      %v2065 = vsub.f32 %v1964, %v2062
      %v2066 = vsub.f32 %v1965, %v2062
      %v2067 = vperm.slane %v2061, 0
      %v2068 = vmul.f32 %v2063, %v2067
      %v2069 = vmul.f32 %v2064, %v2067
      %v2070 = vmul.f32 %v2065, %v2067
      %v2071 = vmul.f32 %v2066, %v2067
      %v2072 = vperm.slane %v1983, 0
      %v2073 = vadd.f32 %v2068, %v2072
      %v2074 = vadd.f32 %v2069, %v2072
      %v2075 = vadd.f32 %v2070, %v2072
      %v2076 = vadd.f32 %v2071, %v2072
      %v2077 = vmax.f32 %v2073, 0.0
      %v2078 = vmax.f32 %v2074, 0.0
      %v2079 = vmax.f32 %v2075, 0.0
      %v2080 = vmax.f32 %v2076, 0.0
      %2081 = vst [vmem:[#allocation3 + $0x3] sm:$0xff] %v2077
      %2082 = vst [vmem:[#allocation3 + $0xb] sm:$0xff] %v2078
      %2083 = vst [vmem:[#allocation3 + $0x1b] sm:$0xff] %v2079
      %2084 = vst [vmem:[#allocation3 + $0x23] sm:$0xff] %v2080
      %v2085 = vld [vmem:[#allocation3] sm:$0xff]
      %v2086 = vld [vmem:[#allocation3 + $0x8] sm:$0xff]
      %v2087 = vld [vmem:[#allocation3 + $0x18] sm:$0xff]
      %v2088 = vld [vmem:[#allocation3 + $0x20] sm:$0xff]
      %v2089 = vpack.c.bf16 %v2085, %v2085
      %v2090 = vpack.c.bf16 %v2086, %v2086
      %v2091 = vpack.c.bf16 %v2087, %v2087
      %v2092 = vpack.c.bf16 %v2088, %v2088
      %v2093 = vld [vmem:[#allocation3 + $0x1] sm:$0xff]
      %v2094 = vld [vmem:[#allocation3 + $0x9] sm:$0xff]
      %v2095 = vld [vmem:[#allocation3 + $0x19] sm:$0xff]
      %v2096 = vld [vmem:[#allocation3 + $0x21] sm:$0xff]
      %v2097 = vpack.c.bf16 %v2093, %v2093
      %v2098 = vpack.c.bf16 %v2094, %v2094
      %v2099 = vpack.c.bf16 %v2095, %v2095
      %v2100 = vpack.c.bf16 %v2096, %v2096
      %v2101 = vld [vmem:[#allocation3 + $0x2] sm:$0xff]
      %v2102 = vld [vmem:[#allocation3 + $0xa] sm:$0xff]
      %v2103 = vld [vmem:[#allocation3 + $0x1a] sm:$0xff]
      %v2104 = vld [vmem:[#allocation3 + $0x22] sm:$0xff]
      %v2105 = vpack.c.bf16 %v2101, %v2101
      %v2106 = vpack.c.bf16 %v2102, %v2102
      %v2107 = vpack.c.bf16 %v2103, %v2103
      %v2108 = vpack.c.bf16 %v2104, %v2104
      %v2109 = vld [vmem:[#allocation3 + $0x3] sm:$0xff]
      %v2110 = vld [vmem:[#allocation3 + $0xb] sm:$0xff]
      %v2111 = vld [vmem:[#allocation3 + $0x1b] sm:$0xff]
      %v2112 = vld [vmem:[#allocation3 + $0x23] sm:$0xff]
      %v2113 = vpack.c.bf16 %v2109, %v2109
      %v2114 = vpack.c.bf16 %v2110, %v2110
      %v2115 = vpack.c.bf16 %v2111, %v2111
      %v2116 = vpack.c.bf16 %v2112, %v2112
      %v2117 = vld [vmem:[#allocation3 + $0x4] sm:$0xff]
      %v2118 = vld [vmem:[#allocation3 + $0xc] sm:$0xff]
      %v2119 = vld [vmem:[#allocation3 + $0x1c] sm:$0xff]
      %v2120 = vld [vmem:[#allocation3 + $0x24] sm:$0xff]
      %v2121 = vpack.c.bf16 %v2117, %v2117
      %v2122 = vpack.c.bf16 %v2118, %v2118
      %v2123 = vpack.c.bf16 %v2119, %v2119
      %v2124 = vpack.c.bf16 %v2120, %v2120
      %v2125 = vld [vmem:[#allocation3 + $0x5] sm:$0xff]
      %v2126 = vld [vmem:[#allocation3 + $0xd] sm:$0xff]
      %v2127 = vld [vmem:[#allocation3 + $0x1d] sm:$0xff]
      %v2128 = vld [vmem:[#allocation3 + $0x25] sm:$0xff]
      %v2129 = vpack.c.bf16 %v2125, %v2125
      %v2130 = vpack.c.bf16 %v2126, %v2126
      %v2131 = vpack.c.bf16 %v2127, %v2127
      %v2132 = vpack.c.bf16 %v2128, %v2128
      %v2133 = vld [vmem:[#allocation3 + $0x6] sm:$0xff]
      %v2134 = vld [vmem:[#allocation3 + $0xe] sm:$0xff]
      %v2135 = vld [vmem:[#allocation3 + $0x1e] sm:$0xff]
      %v2136 = vld [vmem:[#allocation3 + $0x26] sm:$0xff]
      %v2137 = vpack.c.bf16 %v2133, %v2133
      %v2138 = vpack.c.bf16 %v2134, %v2134
      %v2139 = vpack.c.bf16 %v2135, %v2135
      %v2140 = vpack.c.bf16 %v2136, %v2136
      %v2145 = vunpack.c.l.b16 %v2089
      %v2146 = vunpack.c.l.b16 %v2090
      %v2147 = vunpack.c.l.b16 %v2091
      %v2148 = vunpack.c.l.b16 %v2092
      %v2149 = vpack.c.b16 %v2146, %v2145
      %v2150 = vpack.c.b16 %v2148, %v2147
      %v2157 = vunpack.c.l.b16 %v2097
      %v2158 = vunpack.c.l.b16 %v2098
      %v2159 = vunpack.c.l.b16 %v2099
      %v2160 = vunpack.c.l.b16 %v2100
      %v2161 = vpack.c.b16 %v2158, %v2157
      %v2162 = vpack.c.b16 %v2160, %v2159
      %v2169 = vunpack.c.l.b16 %v2105
      %v2170 = vunpack.c.l.b16 %v2106
      %v2171 = vunpack.c.l.b16 %v2107
      %v2172 = vunpack.c.l.b16 %v2108
      %v2173 = vpack.c.b16 %v2170, %v2169
      %v2174 = vpack.c.b16 %v2172, %v2171
      %v2181 = vunpack.c.l.b16 %v2113
      %v2182 = vunpack.c.l.b16 %v2114
      %v2183 = vunpack.c.l.b16 %v2115
      %v2184 = vunpack.c.l.b16 %v2116
      %v2185 = vpack.c.b16 %v2182, %v2181
      %v2186 = vpack.c.b16 %v2184, %v2183
      %v2193 = vunpack.c.l.b16 %v2121
      %v2194 = vunpack.c.l.b16 %v2122
      %v2195 = vunpack.c.l.b16 %v2123
      %v2196 = vunpack.c.l.b16 %v2124
      %v2197 = vpack.c.b16 %v2194, %v2193
      %v2198 = vpack.c.b16 %v2196, %v2195
      %v2205 = vunpack.c.l.b16 %v2129
      %v2206 = vunpack.c.l.b16 %v2130
      %v2207 = vunpack.c.l.b16 %v2131
      %v2208 = vunpack.c.l.b16 %v2132
      %v2209 = vpack.c.b16 %v2206, %v2205
      %v2210 = vpack.c.b16 %v2208, %v2207
      %v2217 = vunpack.c.l.b16 %v2137
      %v2218 = vunpack.c.l.b16 %v2138
      %v2219 = vunpack.c.l.b16 %v2139
      %v2220 = vunpack.c.l.b16 %v2140
      %v2221 = vpack.c.b16 %v2218, %v2217
      %v2222 = vpack.c.b16 %v2220, %v2219
      %v2225 = vld [vmem:[%s316] sm:$0xf]
      %v2226 = vld [vmem:[%s316 + $0x4] sm:$0xf]
      %v2227 = vld [vmem:[%s316 + $0x8] sm:$0xf]
      %v2228 = vld [vmem:[%s316 + $0xc] sm:$0xf]
      %v2229 = vld [vmem:[%s316 + $0x10] sm:$0xf]
      %v2230 = vld [vmem:[%s316 + $0x14] sm:$0xf]
      %v2231 = vld [vmem:[%s316 + $0x18] sm:$0xf]
      %v2232 = vld [vmem:[%s316 + $0x1c] sm:$0xf]
      %v2233 = vld [vmem:[%s316 + $0x20] sm:$0xf]
      %v2234 = vld [vmem:[%s316 + $0x24] sm:$0xf]
      %v2235 = vld [vmem:[%s316 + $0x28] sm:$0xf]
      %v2236 = vld [vmem:[%s316 + $0x2c] sm:$0xf]
      %v2237 = vld [vmem:[%s316 + $0x30] sm:$0xf]
      %v2238 = vld [vmem:[%s316 + $0x34] sm:$0xf]
      %v2239 = vld [vmem:[%s316 + $0x38] sm:$0xf]
      %v2240 = vld [vmem:[%s316 + $0x3c] sm:$0xf]
      %v2241 = vld [vmem:[%s316 + $0x40] sm:$0xf]
      %v2242 = vld [vmem:[%s316 + $0x44] sm:$0xf]
      %v2243 = vld [vmem:[%s316 + $0x48] sm:$0xf]
      %v2244 = vld [vmem:[%s316 + $0x4c] sm:$0xf]
      %v2245 = vld [vmem:[%s316 + $0x50] sm:$0xf]
      %v2246 = vld [vmem:[%s316 + $0x54] sm:$0xf]
      %v2247 = vld [vmem:[%s316 + $0x58] sm:$0xf]
      %v2248 = vld [vmem:[%s316 + $0x5c] sm:$0xf]
      %v2249 = vld [vmem:[%s316 + $0x60] sm:$0xf]
      %v2250 = vld [vmem:[%s316 + $0x64] sm:$0xf]
      %v2251 = vld [vmem:[%s316 + $0x68] sm:$0xf]
      %v2252 = vld [vmem:[%s316 + $0x6c] sm:$0xf]
      %v2253 = vld [vmem:[%s316 + $0x70] sm:$0xf]
      %v2254 = vld [vmem:[%s316 + $0x74] sm:$0xf]
      %v2255 = vld [vmem:[%s316 + $0x78] sm:$0xf]
      %v2256 = vld [vmem:[%s316 + $0x7c] sm:$0xf]
      %v2257 = vld [vmem:[%s316 + $0x80] sm:$0xf]
      %v2258 = vld [vmem:[%s316 + $0x84] sm:$0xf]
      %v2259 = vld [vmem:[%s316 + $0x88] sm:$0xf]
      %v2260 = vld [vmem:[%s316 + $0x8c] sm:$0xf]
      %v2261 = vld [vmem:[%s316 + $0x90] sm:$0xf]
      %v2262 = vld [vmem:[%s316 + $0x94] sm:$0xf]
      %v2263 = vld [vmem:[%s316 + $0x98] sm:$0xf]
      %v2264 = vld [vmem:[%s316 + $0x9c] sm:$0xf]
      %v2265 = vld [vmem:[%s316 + $0xa0] sm:$0xf]
      %v2266 = vld [vmem:[%s316 + $0xa4] sm:$0xf]
      %v2267 = vld [vmem:[%s316 + $0xa8] sm:$0xf]
      %v2268 = vld [vmem:[%s316 + $0xac] sm:$0xf]
      %v2269 = vld [vmem:[%s316 + $0xb0] sm:$0xf]
      %v2270 = vld [vmem:[%s316 + $0xb4] sm:$0xf]
      %v2271 = vld [vmem:[%s316 + $0xb8] sm:$0xf]
      %v2272 = vld [vmem:[%s316 + $0xbc] sm:$0xf]
      %v2273 = vld [vmem:[%s316 + $0xc0] sm:$0xf]
      %v2274 = vld [vmem:[%s316 + $0xc4] sm:$0xf]
      %v2275 = vld [vmem:[%s316 + $0xc8] sm:$0xf]
      %v2276 = vld [vmem:[%s316 + $0xcc] sm:$0xf]
      %v2277 = vld [vmem:[%s316 + $0xd0] sm:$0xf]
      %v2278 = vld [vmem:[%s316 + $0xd4] sm:$0xf]
      %v2279 = vld [vmem:[%s316 + $0xd8] sm:$0xf]
      %v2280 = vld [vmem:[%s316 + $0xdc] sm:$0xf]
      %v2281 = vld [vmem:[%s316 + $0xe0] sm:$0xf]
      %v2282 = vld [vmem:[%s316 + $0xe4] sm:$0xf]
      %v2283 = vld [vmem:[%s316 + $0xe8] sm:$0xf]
      %v2284 = vld [vmem:[%s316 + $0xec] sm:$0xf]
      %v2285 = vld [vmem:[%s316 + $0xf0] sm:$0xf]
      %v2286 = vld [vmem:[%s316 + $0xf4] sm:$0xf]
      %v2287 = vld [vmem:[%s316 + $0xf8] sm:$0xf]
      %v2288 = vld [vmem:[%s316 + $0xfc] sm:$0xf]
      %v2289 = vld [vmem:[%s316 + $0x100] sm:$0xf]
      %v2290 = vld [vmem:[%s316 + $0x104] sm:$0xf]
      %v2291 = vld [vmem:[%s316 + $0x108] sm:$0xf]
      %v2292 = vld [vmem:[%s316 + $0x10c] sm:$0xf]
      %v2293 = vld [vmem:[%s316 + $0x110] sm:$0xf]
      %v2294 = vld [vmem:[%s316 + $0x114] sm:$0xf]
      %v2295 = vld [vmem:[%s316 + $0x118] sm:$0xf]
      %v2296 = vld [vmem:[%s316 + $0x11c] sm:$0xf]
      %v2297 = vld [vmem:[%s316 + $0x120] sm:$0xf]
      %v2298 = vld [vmem:[%s316 + $0x124] sm:$0xf]
      %v2299 = vld [vmem:[%s316 + $0x128] sm:$0xf]
      %v2300 = vld [vmem:[%s316 + $0x12c] sm:$0xf]
      %v2301 = vld [vmem:[%s316 + $0x130] sm:$0xf]
      %v2302 = vld [vmem:[%s316 + $0x134] sm:$0xf]
      %v2303 = vld [vmem:[%s316 + $0x138] sm:$0xf]
      %v2304 = vld [vmem:[%s316 + $0x13c] sm:$0xf]
      %v2305 = vld [vmem:[%s316 + $0x140] sm:$0xf]
      %v2306 = vld [vmem:[%s316 + $0x144] sm:$0xf]
      %v2307 = vld [vmem:[%s316 + $0x148] sm:$0xf]
      %v2308 = vld [vmem:[%s316 + $0x14c] sm:$0xf]
      %v2309 = vld [vmem:[%s316 + $0x150] sm:$0xf]
      %v2310 = vld [vmem:[%s316 + $0x154] sm:$0xf]
      %v2311 = vld [vmem:[%s316 + $0x158] sm:$0xf]
      %v2312 = vld [vmem:[%s316 + $0x15c] sm:$0xf]
      %v2313 = vld [vmem:[%s316 + $0x160] sm:$0xf]
      %v2314 = vld [vmem:[%s316 + $0x164] sm:$0xf]
      %v2315 = vld [vmem:[%s316 + $0x168] sm:$0xf]
      %v2316 = vld [vmem:[%s316 + $0x16c] sm:$0xf]
      %v2317 = vld [vmem:[%s316 + $0x170] sm:$0xf]
      %v2318 = vld [vmem:[%s316 + $0x174] sm:$0xf]
      %v2319 = vld [vmem:[%s316 + $0x178] sm:$0xf]
      %v2320 = vld [vmem:[%s316 + $0x17c] sm:$0xf]
      %v2321 = vld [vmem:[%s316 + $0x180] sm:$0xf]
      %v2322 = vld [vmem:[%s316 + $0x184] sm:$0xf]
      %v2323 = vld [vmem:[%s316 + $0x188] sm:$0xf]
      %v2324 = vld [vmem:[%s316 + $0x18c] sm:$0xf]
      %v2325 = vld [vmem:[%s316 + $0x190] sm:$0xf]
      %v2326 = vld [vmem:[%s316 + $0x194] sm:$0xf]
      %v2327 = vld [vmem:[%s316 + $0x198] sm:$0xf]
      %v2328 = vld [vmem:[%s316 + $0x19c] sm:$0xf]
      %v2329 = vld [vmem:[%s316 + $0x1a0] sm:$0xf]
      %v2330 = vld [vmem:[%s316 + $0x1a4] sm:$0xf]
      %v2331 = vld [vmem:[%s316 + $0x1a8] sm:$0xf]
      %v2332 = vld [vmem:[%s316 + $0x1ac] sm:$0xf]
      %v2333 = vld [vmem:[%s316 + $0x1b0] sm:$0xf]
      %v2334 = vld [vmem:[%s316 + $0x1b4] sm:$0xf]
      %v2335 = vld [vmem:[%s316 + $0x1b8] sm:$0xf]
      %v2336 = vld [vmem:[%s316 + $0x1bc] sm:$0xf]
      %v2449 = vunpack.c.l.b16 %v2225
      %v2450 = vunpack.c.l.b16 %v2226
      %v2451 = vunpack.c.l.b16 %v2227
      %v2452 = vunpack.c.l.b16 %v2228
      %v2453 = vunpack.c.l.b16 %v2229
      %v2454 = vunpack.c.l.b16 %v2230
      %v2455 = vunpack.c.l.b16 %v2231
      %v2456 = vunpack.c.l.b16 %v2232
      %v2457 = vunpack.c.l.b16 %v2233
      %v2458 = vunpack.c.l.b16 %v2234
      %v2459 = vunpack.c.l.b16 %v2235
      %v2460 = vunpack.c.l.b16 %v2236
      %v2461 = vunpack.c.l.b16 %v2237
      %v2462 = vunpack.c.l.b16 %v2238
      %v2463 = vunpack.c.l.b16 %v2239
      %v2464 = vunpack.c.l.b16 %v2240
      %v2465 = vunpack.c.l.b16 %v2241
      %v2466 = vunpack.c.l.b16 %v2242
      %v2467 = vunpack.c.l.b16 %v2243
      %v2468 = vunpack.c.l.b16 %v2244
      %v2469 = vunpack.c.l.b16 %v2245
      %v2470 = vunpack.c.l.b16 %v2246
      %v2471 = vunpack.c.l.b16 %v2247
      %v2472 = vunpack.c.l.b16 %v2248
      %v2473 = vunpack.c.l.b16 %v2249
      %v2474 = vunpack.c.l.b16 %v2250
      %v2475 = vunpack.c.l.b16 %v2251
      %v2476 = vunpack.c.l.b16 %v2252
      %v2477 = vunpack.c.l.b16 %v2253
      %v2478 = vunpack.c.l.b16 %v2254
      %v2479 = vunpack.c.l.b16 %v2255
      %v2480 = vunpack.c.l.b16 %v2256
      %v2481 = vunpack.c.l.b16 %v2257
      %v2482 = vunpack.c.l.b16 %v2258
      %v2483 = vunpack.c.l.b16 %v2259
      %v2484 = vunpack.c.l.b16 %v2260
      %v2485 = vunpack.c.l.b16 %v2261
      %v2486 = vunpack.c.l.b16 %v2262
      %v2487 = vunpack.c.l.b16 %v2263
      %v2488 = vunpack.c.l.b16 %v2264
      %v2489 = vunpack.c.l.b16 %v2265
      %v2490 = vunpack.c.l.b16 %v2266
      %v2491 = vunpack.c.l.b16 %v2267
      %v2492 = vunpack.c.l.b16 %v2268
      %v2493 = vunpack.c.l.b16 %v2269
      %v2494 = vunpack.c.l.b16 %v2270
      %v2495 = vunpack.c.l.b16 %v2271
      %v2496 = vunpack.c.l.b16 %v2272
      %v2497 = vunpack.c.l.b16 %v2273
      %v2498 = vunpack.c.l.b16 %v2274
      %v2499 = vunpack.c.l.b16 %v2275
      %v2500 = vunpack.c.l.b16 %v2276
      %v2501 = vunpack.c.l.b16 %v2277
      %v2502 = vunpack.c.l.b16 %v2278
      %v2503 = vunpack.c.l.b16 %v2279
      %v2504 = vunpack.c.l.b16 %v2280
      %v2505 = vunpack.c.l.b16 %v2281
      %v2506 = vunpack.c.l.b16 %v2282
      %v2507 = vunpack.c.l.b16 %v2283
      %v2508 = vunpack.c.l.b16 %v2284
      %v2509 = vunpack.c.l.b16 %v2285
      %v2510 = vunpack.c.l.b16 %v2286
      %v2511 = vunpack.c.l.b16 %v2287
      %v2512 = vunpack.c.l.b16 %v2288
      %v2513 = vunpack.c.l.b16 %v2289
      %v2514 = vunpack.c.l.b16 %v2290
      %v2515 = vunpack.c.l.b16 %v2291
      %v2516 = vunpack.c.l.b16 %v2292
      %v2517 = vunpack.c.l.b16 %v2293
      %v2518 = vunpack.c.l.b16 %v2294
      %v2519 = vunpack.c.l.b16 %v2295
      %v2520 = vunpack.c.l.b16 %v2296
      %v2521 = vunpack.c.l.b16 %v2297
      %v2522 = vunpack.c.l.b16 %v2298
      %v2523 = vunpack.c.l.b16 %v2299
      %v2524 = vunpack.c.l.b16 %v2300
      %v2525 = vunpack.c.l.b16 %v2301
      %v2526 = vunpack.c.l.b16 %v2302
      %v2527 = vunpack.c.l.b16 %v2303
      %v2528 = vunpack.c.l.b16 %v2304
      %v2529 = vunpack.c.l.b16 %v2305
      %v2530 = vunpack.c.l.b16 %v2306
      %v2531 = vunpack.c.l.b16 %v2307
      %v2532 = vunpack.c.l.b16 %v2308
      %v2533 = vunpack.c.l.b16 %v2309
      %v2534 = vunpack.c.l.b16 %v2310
      %v2535 = vunpack.c.l.b16 %v2311
      %v2536 = vunpack.c.l.b16 %v2312
      %v2537 = vunpack.c.l.b16 %v2313
      %v2538 = vunpack.c.l.b16 %v2314
      %v2539 = vunpack.c.l.b16 %v2315
      %v2540 = vunpack.c.l.b16 %v2316
      %v2541 = vunpack.c.l.b16 %v2317
      %v2542 = vunpack.c.l.b16 %v2318
      %v2543 = vunpack.c.l.b16 %v2319
      %v2544 = vunpack.c.l.b16 %v2320
      %v2545 = vunpack.c.l.b16 %v2321
      %v2546 = vunpack.c.l.b16 %v2322
      %v2547 = vunpack.c.l.b16 %v2323
      %v2548 = vunpack.c.l.b16 %v2324
      %v2549 = vunpack.c.l.b16 %v2325
      %v2550 = vunpack.c.l.b16 %v2326
      %v2551 = vunpack.c.l.b16 %v2327
      %v2552 = vunpack.c.l.b16 %v2328
      %v2553 = vunpack.c.l.b16 %v2329
      %v2554 = vunpack.c.l.b16 %v2330
      %v2555 = vunpack.c.l.b16 %v2331
      %v2556 = vunpack.c.l.b16 %v2332
      %v2557 = vunpack.c.l.b16 %v2333
      %v2558 = vunpack.c.l.b16 %v2334
      %v2559 = vunpack.c.l.b16 %v2335
      %v2560 = vunpack.c.l.b16 %v2336
      %v2561 = vpack.c.b16 %v2450, %v2449
      %v2562 = vpack.c.b16 %v2452, %v2451
      %v2563 = vpack.c.b16 %v2454, %v2453
      %v2564 = vpack.c.b16 %v2456, %v2455
      %v2565 = vpack.c.b16 %v2458, %v2457
      %v2566 = vpack.c.b16 %v2460, %v2459
      %v2567 = vpack.c.b16 %v2462, %v2461
      %v2568 = vpack.c.b16 %v2464, %v2463
      %v2569 = vpack.c.b16 %v2466, %v2465
      %v2570 = vpack.c.b16 %v2468, %v2467
      %v2571 = vpack.c.b16 %v2470, %v2469
      %v2572 = vpack.c.b16 %v2472, %v2471
      %v2573 = vpack.c.b16 %v2474, %v2473
      %v2574 = vpack.c.b16 %v2476, %v2475
      %v2575 = vpack.c.b16 %v2478, %v2477
      %v2576 = vpack.c.b16 %v2480, %v2479
      %v2577 = vpack.c.b16 %v2482, %v2481
      %v2578 = vpack.c.b16 %v2484, %v2483
      %v2579 = vpack.c.b16 %v2486, %v2485
      %v2580 = vpack.c.b16 %v2488, %v2487
      %v2581 = vpack.c.b16 %v2490, %v2489
      %v2582 = vpack.c.b16 %v2492, %v2491
      %v2583 = vpack.c.b16 %v2494, %v2493
      %v2584 = vpack.c.b16 %v2496, %v2495
      %v2585 = vpack.c.b16 %v2498, %v2497
      %v2586 = vpack.c.b16 %v2500, %v2499
      %v2587 = vpack.c.b16 %v2502, %v2501
      %v2588 = vpack.c.b16 %v2504, %v2503
      %v2589 = vpack.c.b16 %v2506, %v2505
      %v2590 = vpack.c.b16 %v2508, %v2507
      %v2591 = vpack.c.b16 %v2510, %v2509
      %v2592 = vpack.c.b16 %v2512, %v2511
      %v2593 = vpack.c.b16 %v2514, %v2513
      %v2594 = vpack.c.b16 %v2516, %v2515
      %v2595 = vpack.c.b16 %v2518, %v2517
      %v2596 = vpack.c.b16 %v2520, %v2519
      %v2597 = vpack.c.b16 %v2522, %v2521
      %v2598 = vpack.c.b16 %v2524, %v2523
      %v2599 = vpack.c.b16 %v2526, %v2525
      %v2600 = vpack.c.b16 %v2528, %v2527
      %v2601 = vpack.c.b16 %v2530, %v2529
      %v2602 = vpack.c.b16 %v2532, %v2531
      %v2603 = vpack.c.b16 %v2534, %v2533
      %v2604 = vpack.c.b16 %v2536, %v2535
      %v2605 = vpack.c.b16 %v2538, %v2537
      %v2606 = vpack.c.b16 %v2540, %v2539
      %v2607 = vpack.c.b16 %v2542, %v2541
      %v2608 = vpack.c.b16 %v2544, %v2543
      %v2609 = vpack.c.b16 %v2546, %v2545
      %v2610 = vpack.c.b16 %v2548, %v2547
      %v2611 = vpack.c.b16 %v2550, %v2549
      %v2612 = vpack.c.b16 %v2552, %v2551
      %v2613 = vpack.c.b16 %v2554, %v2553
      %v2614 = vpack.c.b16 %v2556, %v2555
      %v2615 = vpack.c.b16 %v2558, %v2557
      %v2616 = vpack.c.b16 %v2560, %v2559
      %2673 = vmatpush.bf16.msra.mxu0 %v2568
      %2674 = vmatpush.bf16.msra.mxu0 %v2567
      %2675 = vmatpush.bf16.msra.mxu0 %v2566
      %2676 = vmatpush.bf16.msra.mxu0 %v2565
      %2677 = vmatpush.bf16.msra.mxu0 %v2564
      %2678 = vmatpush.bf16.msra.mxu0 %v2563
      %2679 = vmatpush.bf16.msra.mxu0 %v2562
      %2680 = vmatpush.bf16.msra.mxu0 %v2561
      %2681 = vmatmul.bf16.gmra.mxu0 %v2149
      %v2682 = vpop.f32.mrf.mxu0
      %v2683 = vadd.f32 0.0, %v2682
      %v2684 = vpop.f32.mrf.mxu0
      %v2685 = vadd.f32 0.0, %v2684
      %2686 = vmatmul.bf16.gmra.mxu0 %v2150
      %v2687 = vpop.f32.mrf.mxu0
      %v2688 = vadd.f32 0.0, %v2687
      %v2689 = vpop.f32.mrf.mxu0
      %v2690 = vadd.f32 0.0, %v2689
      %2691 = vdwg.mxu0
      %2692 = vmatpush.bf16.msra.mxu0 %v2576
      %2693 = vmatpush.bf16.msra.mxu0 %v2575
      %2694 = vmatpush.bf16.msra.mxu0 %v2574
      %2695 = vmatpush.bf16.msra.mxu0 %v2573
      %2696 = vmatpush.bf16.msra.mxu0 %v2572
      %2697 = vmatpush.bf16.msra.mxu0 %v2571
      %2698 = vmatpush.bf16.msra.mxu0 %v2570
      %2699 = vmatpush.bf16.msra.mxu0 %v2569
      %2700 = vmatmul.bf16.gmra.mxu0 %v2161
      %v2701 = vpop.f32.mrf.mxu0
      %v2702 = vadd.f32 %v2683, %v2701
      %v2703 = vpop.f32.mrf.mxu0
      %v2704 = vadd.f32 %v2685, %v2703
      %2705 = vmatmul.bf16.gmra.mxu0 %v2162
      %v2706 = vpop.f32.mrf.mxu0
      %v2707 = vadd.f32 %v2688, %v2706
      %v2708 = vpop.f32.mrf.mxu0
      %v2709 = vadd.f32 %v2690, %v2708
      %2710 = vdwg.mxu0
      %2711 = vmatpush.bf16.msra.mxu0 %v2584
      %2712 = vmatpush.bf16.msra.mxu0 %v2583
      %2713 = vmatpush.bf16.msra.mxu0 %v2582
      %2714 = vmatpush.bf16.msra.mxu0 %v2581
      %2715 = vmatpush.bf16.msra.mxu0 %v2580
      %2716 = vmatpush.bf16.msra.mxu0 %v2579
      %2717 = vmatpush.bf16.msra.mxu0 %v2578
      %2718 = vmatpush.bf16.msra.mxu0 %v2577
      %2719 = vmatmul.bf16.gmra.mxu0 %v2173
      %v2720 = vpop.f32.mrf.mxu0
      %v2721 = vadd.f32 %v2702, %v2720
      %v2722 = vpop.f32.mrf.mxu0
      %v2723 = vadd.f32 %v2704, %v2722
      %2724 = vmatmul.bf16.gmra.mxu0 %v2174
      %v2725 = vpop.f32.mrf.mxu0
      %v2726 = vadd.f32 %v2707, %v2725
      %v2727 = vpop.f32.mrf.mxu0
      %v2728 = vadd.f32 %v2709, %v2727
      %2729 = vdwg.mxu0
      %2730 = vmatpush.bf16.msra.mxu0 %v2592
      %2731 = vmatpush.bf16.msra.mxu0 %v2591
      %2732 = vmatpush.bf16.msra.mxu0 %v2590
      %2733 = vmatpush.bf16.msra.mxu0 %v2589
      %2734 = vmatpush.bf16.msra.mxu0 %v2588
      %2735 = vmatpush.bf16.msra.mxu0 %v2587
      %2736 = vmatpush.bf16.msra.mxu0 %v2586
      %2737 = vmatpush.bf16.msra.mxu0 %v2585
      %2738 = vmatmul.bf16.gmra.mxu0 %v2185
      %v2739 = vpop.f32.mrf.mxu0
      %v2740 = vadd.f32 %v2721, %v2739
      %v2741 = vpop.f32.mrf.mxu0
      %v2742 = vadd.f32 %v2723, %v2741
      %2743 = vmatmul.bf16.gmra.mxu0 %v2186
      %v2744 = vpop.f32.mrf.mxu0
      %v2745 = vadd.f32 %v2726, %v2744
      %v2746 = vpop.f32.mrf.mxu0
      %v2747 = vadd.f32 %v2728, %v2746
      %2748 = vdwg.mxu0
      %2749 = vmatpush.bf16.msra.mxu0 %v2600
      %2750 = vmatpush.bf16.msra.mxu0 %v2599
      %2751 = vmatpush.bf16.msra.mxu0 %v2598
      %2752 = vmatpush.bf16.msra.mxu0 %v2597
      %2753 = vmatpush.bf16.msra.mxu0 %v2596
      %2754 = vmatpush.bf16.msra.mxu0 %v2595
      %2755 = vmatpush.bf16.msra.mxu0 %v2594
      %2756 = vmatpush.bf16.msra.mxu0 %v2593
      %2757 = vmatmul.bf16.gmra.mxu0 %v2197
      %v2758 = vpop.f32.mrf.mxu0
      %v2759 = vadd.f32 %v2740, %v2758
      %v2760 = vpop.f32.mrf.mxu0
      %v2761 = vadd.f32 %v2742, %v2760
      %2762 = vmatmul.bf16.gmra.mxu0 %v2198
      %v2763 = vpop.f32.mrf.mxu0
      %v2764 = vadd.f32 %v2745, %v2763
      %v2765 = vpop.f32.mrf.mxu0
      %v2766 = vadd.f32 %v2747, %v2765
      %2767 = vdwg.mxu0
      %2768 = vmatpush.bf16.msra.mxu0 %v2608
      %2769 = vmatpush.bf16.msra.mxu0 %v2607
      %2770 = vmatpush.bf16.msra.mxu0 %v2606
      %2771 = vmatpush.bf16.msra.mxu0 %v2605
      %2772 = vmatpush.bf16.msra.mxu0 %v2604
      %2773 = vmatpush.bf16.msra.mxu0 %v2603
      %2774 = vmatpush.bf16.msra.mxu0 %v2602
      %2775 = vmatpush.bf16.msra.mxu0 %v2601
      %2776 = vmatmul.bf16.gmra.mxu0 %v2209
      %v2777 = vpop.f32.mrf.mxu0
      %v2778 = vadd.f32 %v2759, %v2777
      %v2779 = vpop.f32.mrf.mxu0
      %v2780 = vadd.f32 %v2761, %v2779
      %2781 = vmatmul.bf16.gmra.mxu0 %v2210
      %v2782 = vpop.f32.mrf.mxu0
      %v2783 = vadd.f32 %v2764, %v2782
      %v2784 = vpop.f32.mrf.mxu0
      %v2785 = vadd.f32 %v2766, %v2784
      %2786 = vdwg.mxu0
      %2787 = vmatpush.bf16.msra.mxu0 %v2616
      %2788 = vmatpush.bf16.msra.mxu0 %v2615
      %2789 = vmatpush.bf16.msra.mxu0 %v2614
      %2790 = vmatpush.bf16.msra.mxu0 %v2613
      %2791 = vmatpush.bf16.msra.mxu0 %v2612
      %2792 = vmatpush.bf16.msra.mxu0 %v2611
      %2793 = vmatpush.bf16.msra.mxu0 %v2610
      %2794 = vmatpush.bf16.msra.mxu0 %v2609
      %2795 = vmatmul.bf16.gmra.mxu0 %v2221
      %v2796 = vpop.f32.mrf.mxu0
      %v2797 = vadd.f32 %v2778, %v2796
      %v2798 = vpop.f32.mrf.mxu0
      %v2799 = vadd.f32 %v2780, %v2798
      %2800 = vmatmul.bf16.gmra.mxu0 %v2222
      %v2801 = vpop.f32.mrf.mxu0
      %v2802 = vadd.f32 %v2783, %v2801
      %v2803 = vpop.f32.mrf.mxu0
      %v2804 = vadd.f32 %v2785, %v2803
      %2805 = vdwg.mxu0
      %v2806 = vld [vmem:[%s4] sm:$0xff]
      %v2807 = vld [vmem:[%s4 + $0x8] sm:$0xff]
      %v2808 = vld [vmem:[%s4 + $0x10] sm:$0xff]
      %v2809 = vld [vmem:[%s4 + $0x18] sm:$0xff]
      %v2810 = vld [vmem:[%s4 + $0x20] sm:$0xff]
      %v2811 = vld [vmem:[%s4 + $0x28] sm:$0xff]
      %v2812 = vld [vmem:[%s4 + $0x30] sm:$0xff]
      %v2813 = vld [vmem:[%s4 + $0x38] sm:$0xff]
      %v2814 = vld [vmem:[%s4 + $0x40] sm:$0xff]
      %v2815 = vld [vmem:[%s4 + $0x48] sm:$0xff]
      %v2816 = vld [vmem:[%s4 + $0x50] sm:$0xff]
      %v2817 = vld [vmem:[%s4 + $0x58] sm:$0xff]
      %v2818 = vld [vmem:[%s4 + $0x60] sm:$0xff]
      %v2819 = vld [vmem:[%s4 + $0x68] sm:$0xff]
      %v2820 = vld [vmem:[%s4 + $0x70] sm:$0xff]
      %v2821 = vld [vmem:[%s4 + $0x78] sm:$0xff]
      %v2822 = vld [vmem:[%s324] sm:$0x1]
      %v2823 = vld [vmem:[%s324 + $0x1] sm:$0x1]
      %v2824 = vadd.f32 %v2797, %v2799
      %v2825 = vadd.f32 %v2824, %v2802
      %v2826 = vadd.f32 %v2825, %v2804
      %v2827 = vrot.slane %v2826, 4
      %v2828 = vadd.f32 %v2826, %v2827
      %v2829 = vrot.slane %v2828, 2
      %v2830 = vadd.f32 %v2828, %v2829
      %v2831 = vrot.slane %v2830, 1
      %v2832 = vadd.f32 %v2830, %v2831
      %v2833 = vmul.f32 %v2797, %v2797
      %v2834 = vmul.f32 %v2799, %v2799
      %v2835 = vmul.f32 %v2802, %v2802
      %v2836 = vmul.f32 %v2804, %v2804
      %v2837 = vadd.f32 %v2833, %v2834
      %v2838 = vadd.f32 %v2837, %v2835
      %v2839 = vadd.f32 %v2838, %v2836
      %v2840 = vrot.slane %v2839, 4
      %v2841 = vadd.f32 %v2839, %v2840
      %v2842 = vrot.slane %v2841, 2
      %v2843 = vadd.f32 %v2841, %v2842
      %v2844 = vrot.slane %v2843, 1
      %v2845 = vadd.f32 %v2843, %v2844
      %2846 = vmatpush.msra.mxu0 %v2821
      %2847 = vmatpush.msra.mxu0 %v2820
      %2848 = vmatpush.msra.mxu0 %v2819
      %2849 = vmatpush.msra.mxu0 %v2818
      %2850 = vmatpush.msra.mxu0 %v2817
      %2851 = vmatpush.msra.mxu0 %v2816
      %2852 = vmatpush.msra.mxu0 %v2815
      %2853 = vmatpush.msra.mxu0 %v2814
      %2854 = vmatpush.msra.mxu0 %v2813
      %2855 = vmatpush.msra.mxu0 %v2812
      %2856 = vmatpush.msra.mxu0 %v2811
      %2857 = vmatpush.msra.mxu0 %v2810
      %2858 = vmatpush.msra.mxu0 %v2809
      %2859 = vmatpush.msra.mxu0 %v2808
      %2860 = vmatpush.msra.mxu0 %v2807
      %2861 = vmatpush.msra.mxu0 %v2806
      %2862 = vmatmul.f32.gmra.mxu0 %v2832
      %v2863 = vpop.f32.mrf.mxu0
      %v2864 = vadd.f32 0.0, %v2863
      %2865 = vdwg.mxu0
      %v2866 = vmul.f32 %v2864, 0.001953125
      %2867 = vmatpush.msra.mxu0 %v2821
      %2868 = vmatpush.msra.mxu0 %v2820
      %2869 = vmatpush.msra.mxu0 %v2819
      %2870 = vmatpush.msra.mxu0 %v2818
      %2871 = vmatpush.msra.mxu0 %v2817
      %2872 = vmatpush.msra.mxu0 %v2816
      %2873 = vmatpush.msra.mxu0 %v2815
      %2874 = vmatpush.msra.mxu0 %v2814
      %2875 = vmatpush.msra.mxu0 %v2813
      %2876 = vmatpush.msra.mxu0 %v2812
      %2877 = vmatpush.msra.mxu0 %v2811
      %2878 = vmatpush.msra.mxu0 %v2810
      %2879 = vmatpush.msra.mxu0 %v2809
      %2880 = vmatpush.msra.mxu0 %v2808
      %2881 = vmatpush.msra.mxu0 %v2807
      %2882 = vmatpush.msra.mxu0 %v2806
      %2883 = vmatmul.f32.gmra.mxu0 %v2845
      %v2884 = vpop.f32.mrf.mxu0
      %v2885 = vadd.f32 0.0, %v2884
      %2886 = vdwg.mxu0
      %v2887 = vmul.f32 %v2885, 0.001953125
      %v2888 = vmul.f32 %v2866, %v2866
      %v2889 = vsub.f32 %v2887, %v2888
      %v2890 = vadd.f32 %v2889, 1e-05
      %v2891 = vrsqrt.pop %v2890
      %v2892 = vmul.f32 %v2891, %v2890
      %v2893 = vmul.f32 %v2892, %v2891
      %v2894 = vmul.f32 0.5, %v2893
      %v2895 = vsub.f32 1.5, %v2894
      %v2896 = vmul.f32 %v2891, %v2895
      %vm2897 = vweird.f32 %v2890
      %vm2898 = vweird.f32 %v2891
      %vm2899 = vmor %vm2897, %vm2898
      %v2900 = vsel %vm2899, %v2891, %v2896
      %v2901 = vmul.f32 %v2900, %v2822
      %v2902 = vperm.slane %v2866, 0
      %v2903 = vsub.f32 %v2797, %v2902
      %v2904 = vsub.f32 %v2799, %v2902
      %v2905 = vsub.f32 %v2802, %v2902
      %v2906 = vsub.f32 %v2804, %v2902
      %v2907 = vperm.slane %v2901, 0
      %v2908 = vmul.f32 %v2903, %v2907
      %v2909 = vmul.f32 %v2904, %v2907
      %v2910 = vmul.f32 %v2905, %v2907
      %v2911 = vmul.f32 %v2906, %v2907
      %v2912 = vperm.slane %v2823, 0
      %v2913 = vadd.f32 %v2908, %v2912
      %v2914 = vadd.f32 %v2909, %v2912
      %v2915 = vadd.f32 %v2910, %v2912
      %v2916 = vadd.f32 %v2911, %v2912
      %v2917 = vld [vmem:[#allocation4] sm:$0xff]
      %v2918 = vld [vmem:[#allocation4 + $0x8] sm:$0xff]
      %v2919 = vld [vmem:[#allocation4 + $0x10] sm:$0xff]
      %v2920 = vld [vmem:[#allocation4 + $0x18] sm:$0xff]
      %v2921 = vadd.f32 %v2917, %v2913
      %v2922 = vadd.f32 %v2918, %v2914
      %v2923 = vadd.f32 %v2919, %v2915
      %v2924 = vadd.f32 %v2920, %v2916
      %2925 = vst [vmem:[#allocation4] sm:$0xff] %v2921
      %2926 = vst [vmem:[#allocation4 + $0x8] sm:$0xff] %v2922
      %2927 = vst [vmem:[#allocation4 + $0x10] sm:$0xff] %v2923
      %2928 = vst [vmem:[#allocation4 + $0x18] sm:$0xff] %v2924
      %p2929 = scmp.eq.s32.totalorder %s19, 2
      // Predicated region
      $region57: #{basic_block_search_forward.1} parent=51 // pred_check
        %p2930 = pneg %p2929
      $region58: #{basic_block_search_forward.1} parent=51 // pred_check_branch
        %2932 = sbr.rel (%p2930) target = $region60
      $region59: #{basic_block_search_forward.1} parent=51 // pred_region
        %v2933 = vld [vmem:[%s1] sm:$0xff]
        %v2934 = vld [vmem:[%s1 + $0x8] sm:$0xff]
        %v2935 = vld [vmem:[%s1 + $0x10] sm:$0xff]
        %v2936 = vld [vmem:[%s1 + $0x18] sm:$0xff]
        %v2937 = vld [vmem:[#allocation4] sm:$0xff]
        %v2938 = vld [vmem:[#allocation4 + $0x8] sm:$0xff]
        %v2939 = vld [vmem:[#allocation4 + $0x10] sm:$0xff]
        %v2940 = vld [vmem:[#allocation4 + $0x18] sm:$0xff]
        %v2941 = vadd.f32 %v2933, %v2937
        %v2942 = vadd.f32 %v2934, %v2938
        %v2943 = vadd.f32 %v2935, %v2939
        %v2944 = vadd.f32 %v2936, %v2940
        %v2945 = vmax.f32 %v2941, 0.0
        %v2946 = vmax.f32 %v2942, 0.0
        %v2947 = vmax.f32 %v2943, 0.0
        %v2948 = vmax.f32 %v2944, 0.0
        %2949 = vst [vmem:[%s8] sm:$0xff] %v2945
        %2950 = vst [vmem:[%s8 + $0x8] sm:$0xff] %v2946
        %2951 = vst [vmem:[%s8 + $0x10] sm:$0xff] %v2947
        %2952 = vst [vmem:[%s8 + $0x18] sm:$0xff] %v2948
      $region60: #{basic_block_search_forward.1} parent=51 // pred_fallthru
        _
      // Predicated region
      $region61: #{basic_block_search_forward.1} parent=51 // pred_check
        %p2953 = pneg %p215
      $region62: #{basic_block_search_forward.1} parent=51 // pred_check_branch
        %2955 = sbr.rel (%p2953) target = $region64
      $region63: #{basic_block_search_forward.1} parent=51 // pred_region
        _
      $region64: #{basic_block_search_forward.1} parent=51 // pred_fallthru
        _
      // Predicated region
      $region65: #{basic_block_search_forward.1} parent=51 // pred_check
        %p2956 = pneg %p215
      $region66: #{basic_block_search_forward.1} parent=51 // pred_check_branch
        %2958 = sbr.rel (%p2956) target = $region68
      $region67: #{basic_block_search_forward.1} parent=51 // pred_region
        _
      $region68: #{basic_block_search_forward.1} parent=51 // pred_fallthru
        _
    $region52: #{basic_block_search_forward.1} parent=5 // pred_fallthru
      _
    %p2959 = scmp.le.s32.totalorder 2, %s14
    // Predicated region
    $region69: #{basic_block_search_forward.1} parent=5 // pred_check
      %p2960 = pneg %p2959
    $region70: #{basic_block_search_forward.1} parent=5 // pred_check_branch
      %2962 = sbr.rel (%p2960) target = $region72
    $region71: #{basic_block_search_forward.1} parent=5 // pred_region
      %s2963 = ssub.s32 %s14, 2
    $region72: #{basic_block_search_forward.1} parent=5 // pred_fallthru
      _
  $region6: #{basic_block_search_forward.1} parent=0 // loop_footer
    %s18 = sadd.s32 1, %s14
  $region7: #{basic_block_search_forward.1} parent=0 // loop_footer_branch
    %13 = sbr.rel target = $region3
  $region8: #{basic_block_search_forward.1} parent=0 // loop_exit
    _

</llo_original>
